<compile_context>
chip_gen: v7x
topology: tpu7x:2x2x1
jax: 0.10.0
libtpu: 0.0.40
codegen_flags: <defaults>
</compile_context>

<pallas_src>
import math
import functools

import jax
import jax.numpy as jnp
from jax.experimental import pallas as pl
from jax.experimental.pallas import tpu as pltpu


# ----------------------------------------------------------------------------
# small math helpers (used both inside the Pallas kernel and in the reference)
# ----------------------------------------------------------------------------
def _erf(x):
    # Abramowitz & Stegun 7.1.26, max abs error ~1.5e-7.
    a1, a2, a3, a4, a5 = 0.254829592, -0.284496736, 1.421413741, -1.453152027, 1.061405429
    p = 0.3275911
    s = jnp.where(x >= 0.0, 1.0, -1.0)
    ax = jnp.abs(x)
    t = 1.0 / (1.0 + p * ax)
    poly = ((((a5 * t + a4) * t + a3) * t + a2) * t + a1) * t
    return s * (1.0 - poly * jnp.exp(-ax * ax))


def _gelu(x):
    # nn.GELU() default = exact erf GELU
    return 0.5 * x * (1.0 + _erf(x * 0.7071067811865476))


def _layernorm(x, g, b, eps=1e-5):
    mu = jnp.mean(x, axis=-1, keepdims=True)
    var = jnp.mean((x - mu) ** 2, axis=-1, keepdims=True)
    return (x - mu) * jax.lax.rsqrt(var + eps) * g + b


# per-block stored params / per-block arrays actually fed to the fused kernel
PARAM_ORDER = ("qkv_wT", "qkv_b", "scale", "rel_bias", "proj_wT", "proj_b",
               "g1", "b1", "fc1_wT", "fc1_b", "fc2_wT", "fc2_b", "g2", "b2")
KERNEL_PARAM_ORDER = ("qkv_wT", "qkv_b", "scale", "attn_bias", "proj_wT", "proj_b",
                      "g1", "b1", "fc1_wT", "fc1_b", "fc2_wT", "fc2_b", "g2", "b2")


# ----------------------------------------------------------------------------
# Fused Pallas kernel: grid axis = Swin block index (depth), activation resident
# in the (constant-block-index) output buffer across grid steps.
# ----------------------------------------------------------------------------
def basic_layer_kernel(x_ref, qkv_wT_ref, qkv_b_ref, scale_ref, bias_ref,
                       proj_wT_ref, proj_b_ref, g1_ref, b1_ref,
                       fc1_wT_ref, fc1_b_ref, fc2_wT_ref, fc2_b_ref,
                       g2_ref, b2_ref, o_ref, *, num_heads):
    # Load the input activation into the resident output block on the first step.
    @pl.when(pl.program_id(0) == 0)
    def _():
        o_ref[...] = x_ref[...]

    x = o_ref[...]                       # (rows, C) — rows = B*L, all windows batched
    rows, C = x.shape
    hd = C // num_heads

    # --- QKV projection (with [q_bias, 0, v_bias]) — one full-M matmul ---
    qkv = jnp.dot(x, qkv_wT_ref[...], preferred_element_type=jnp.float32)
    qkv = qkv + qkv_b_ref[...]           # (rows, 3C) + (1, 3C)
    q = qkv[:, :C]
    k = qkv[:, C:2 * C]
    v = qkv[:, 2 * C:]

    scale = scale_ref[...]               # (1, H)
    head_outs = []
    for h in range(num_heads):           # static unroll; each head covers every window
        qh = q[:, h * hd:(h + 1) * hd]   # (rows, hd)
        kh = k[:, h * hd:(h + 1) * hd]
        vh = v[:, h * hd:(h + 1) * hd]
        # cosine attention: F.normalize (eps=1e-12) via rsqrt on clamped squared norm
        qn = qh * jax.lax.rsqrt(jnp.maximum(jnp.sum(qh * qh, -1, keepdims=True), 1e-24))
        kn = kh * jax.lax.rsqrt(jnp.maximum(jnp.sum(kh * kh, -1, keepdims=True), 1e-24))
        s = jnp.dot(qn, kn.T, preferred_element_type=jnp.float32)   # (rows, rows)
        # per-head logit scale + block-diagonal (window-local) rel-pos bias / mask
        s = s * scale[0:1, h:h + 1] + bias_ref[h]
        # softmax over keys (off-window entries carry -1e9 -> exactly 0 weight)
        s = s - jnp.max(s, axis=-1, keepdims=True)
        e = jnp.exp(s)
        p = e / jnp.sum(e, axis=-1, keepdims=True)
        head_outs.append(jnp.dot(p, vh, preferred_element_type=jnp.float32))
    a = jnp.concatenate(head_outs, axis=-1)                         # (rows, C)

    a = jnp.dot(a, proj_wT_ref[...], preferred_element_type=jnp.float32) + proj_b_ref[...]

    # --- res-post-norm residual #1 ---
    x1 = x + _layernorm(a, g1_ref[...], b1_ref[...])

    # --- MLP + res-post-norm residual #2 ---
    h1 = _gelu(jnp.dot(x1, fc1_wT_ref[...], preferred_element_type=jnp.float32) + fc1_b_ref[...])
    m = jnp.dot(h1, fc2_wT_ref[...], preferred_element_type=jnp.float32) + fc2_b_ref[...]
    o_ref[...] = (x1 + _layernorm(m, g2_ref[...], b2_ref[...])).astype(o_ref.dtype)


# ----------------------------------------------------------------------------
# wrapper: stack per-block params along depth, build the block-diagonal window
# bias, call ONE pallas_call for the whole layer.
# ----------------------------------------------------------------------------
def _window_block_bias(rel_bias, num_win):
    """(H, ws, ws) rel-pos bias -> (H, num_win*ws, num_win*ws) additive bias that
    is rel_bias on diagonal window blocks and -1e9 elsewhere, so a full-rows
    softmax equals the per-window softmax exactly."""
    H, ws, _ = rel_bias.shape
    rows = num_win * ws
    win_id = jnp.arange(rows) // ws
    same = win_id[:, None] == win_id[None, :]
    tiled = jnp.tile(rel_bias, (1, num_win, num_win))      # (H, rows, rows)
    return jnp.where(same[None], tiled, jnp.float32(-1e9))


def basic_layer_forward(x, blocks_params, window_size, num_heads):
    """x: (B, L, C) -> (B, L, C)."""
    B, L, C = x.shape
    ws = min(window_size, L)          # SwinTransformerBlock clamps window to resolution
    assert L % ws == 0
    num_win = B * (L // ws)
    rows = num_win * ws               # == B * L
    depth = len(blocks_params)

    stacked = {k: jnp.stack([p[k] for p in blocks_params])
               for k in PARAM_ORDER if k != "rel_bias"}
    stacked["attn_bias"] = jnp.stack(
        [_window_block_bias(p["rel_bias"], num_win) for p in blocks_params])
    arrays = [stacked[k] for k in KERNEL_PARAM_ORDER]

    def dspec(a):
        nd = a.ndim
        # one Swin block's params per grid step; leading depth dim squeezed out
        return pl.BlockSpec((None,) + a.shape[1:],
                            lambda d, _n=nd: (d,) + (0,) * (_n - 1))

    x_flat = x.reshape(rows, C)       # window_partition is a pure reshape (shift 0)

    out = pl.pallas_call(
        functools.partial(basic_layer_kernel, num_heads=num_heads),
        grid=(depth,),
        in_specs=[pl.BlockSpec((rows, C), lambda d: (0, 0))] + [dspec(a) for a in arrays],
        out_specs=pl.BlockSpec((rows, C), lambda d: (0, 0)),
        out_shape=jax.ShapeDtypeStruct((rows, C), x.dtype),
        compiler_params=pltpu.CompilerParams(dimension_semantics=("arbitrary",)),
    )(x_flat, *arrays)
    return out.reshape(B, L, C)


# ----------------------------------------------------------------------------
# Plain-JAX reference (per-window math, no Pallas) for a correctness check
# ----------------------------------------------------------------------------
def swin_block_ref(xw, p, H):
    BW, ws, C = xw.shape
    d = C // H
    qkv = xw @ p["qkv_wT"] + p["qkv_b"]
    q, k, v = jnp.split(qkv, 3, axis=-1)
    split = lambda t: t.reshape(BW, ws, H, d).transpose(0, 2, 1, 3)
    q, k, v = split(q), split(k), split(v)
    qn = q / jnp.maximum(jnp.sqrt(jnp.sum(q * q, -1, keepdims=True)), 1e-12)
    kn = k / jnp.maximum(jnp.sqrt(jnp.sum(k * k, -1, keepdims=True)), 1e-12)
    attn = jnp.einsum("bhqd,bhkd->bhqk", qn, kn) * p["scale"][0][None, :, None, None]
    attn = attn + p["rel_bias"][None]
    attn = jax.nn.softmax(attn, axis=-1)
    a = jnp.einsum("bhqk,bhkd->bhqd", attn, v).transpose(0, 2, 1, 3).reshape(BW, ws, C)
    a = a @ p["proj_wT"] + p["proj_b"]
    x1 = xw + _layernorm(a, p["g1"], p["b1"])
    h1 = _gelu(x1 @ p["fc1_wT"] + p["fc1_b"])
    m = h1 @ p["fc2_wT"] + p["fc2_b"]
    return x1 + _layernorm(m, p["g2"], p["b2"])


def basic_layer_ref(x, blocks_params, window_size, num_heads):
    B, L, C = x.shape
    ws = min(window_size, L)
    for p in blocks_params:
        xw = x.reshape(B * (L // ws), ws, C)
        xw = swin_block_ref(xw, p, num_heads)
        x = xw.reshape(B, L, C)
    return x


# ----------------------------------------------------------------------------
# deterministic parameter init (shapes from the module __init__) + glue precompute
# ----------------------------------------------------------------------------
def init_block_params(key, dim, num_heads, ws, hidden):
    ks = jax.random.split(key, 12)
    s = 0.02
    qkv_w = jax.random.normal(ks[0], (3 * dim, dim), jnp.float32) * s
    q_bias = jax.random.normal(ks[1], (dim,), jnp.float32) * s
    v_bias = jax.random.normal(ks[2], (dim,), jnp.float32) * s
    logit_scale = jnp.log(10.0 * jnp.ones((num_heads,), jnp.float32))
    cpb_w1 = jax.random.normal(ks[3], (512, 1), jnp.float32) * s
    cpb_b1 = jax.random.normal(ks[4], (512,), jnp.float32) * s
    cpb_w2 = jax.random.normal(ks[5], (num_heads, 512), jnp.float32) * s
    proj_w = jax.random.normal(ks[6], (dim, dim), jnp.float32) * s
    proj_b = jax.random.normal(ks[7], (dim,), jnp.float32) * s
    fc1_w = jax.random.normal(ks[8], (hidden, dim), jnp.float32) * s
    fc1_b = jax.random.normal(ks[9], (hidden,), jnp.float32) * s
    fc2_w = jax.random.normal(ks[10], (dim, hidden), jnp.float32) * s
    fc2_b = jax.random.normal(ks[11], (dim,), jnp.float32) * s
    g1 = jnp.ones((dim,), jnp.float32); b1 = jnp.zeros((dim,), jnp.float32)
    g2 = jnp.ones((dim,), jnp.float32); b2 = jnp.zeros((dim,), jnp.float32)

    # --- glue: relative-position bias via cpb_mlp (parameter-only precompute) ---
    denom = max(ws - 1, 1)                                      # guard ws == 1
    rel_coords = jnp.arange(-(ws - 1), ws, dtype=jnp.float32)
    rel_coords = rel_coords / denom * 8.0                       # pretrained_window_size == 0
    rel_coords = jnp.sign(rel_coords) * jnp.log2(jnp.abs(rel_coords) + 1.0) / math.log2(8.0)
    table_in = rel_coords[:, None]                              # (2*ws-1, 1)
    t = jax.nn.relu(table_in @ cpb_w1.T + cpb_b1)               # (2*ws-1, 512)
    table = t @ cpb_w2.T                                        # (2*ws-1, H)
    coords = jnp.arange(ws)
    idx = coords[:, None] - coords[None, :] + ws - 1            # (ws, ws)
    bias = table[idx.reshape(-1)].reshape(ws, ws, num_heads).transpose(2, 0, 1)
    rel_bias = 16.0 * jax.nn.sigmoid(bias)                      # (H, ws, ws)

    # --- glue: clamped/exp'd logit scale and concatenated qkv bias ---
    scale = jnp.exp(jnp.minimum(logit_scale, math.log(1.0 / 0.01)))       # (H,)
    qkv_b = jnp.concatenate([q_bias, jnp.zeros_like(v_bias), v_bias])     # (3C,)

    return dict(
        qkv_wT=qkv_w.T, qkv_b=qkv_b[None, :],
        scale=scale[None, :], rel_bias=rel_bias,
        proj_wT=proj_w.T, proj_b=proj_b[None, :],
        g1=g1[None, :], b1=b1[None, :],
        fc1_wT=fc1_w.T, fc1_b=fc1_b[None, :],
        fc2_wT=fc2_w.T, fc2_b=fc2_b[None, :],
        g2=g2[None, :], b2=b2[None, :],
    )


if __name__ == "__main__":
    # BasicLayer(dim=32, input_resolution=(8,), depth=2, num_heads=4, window_size=8)
    B, L, C = 2, 8, 32
    num_heads = 4
    window_size = 8
    depth = 2
    hidden = int(C * 4.0)

    key = jax.random.PRNGKey(0)
    keys = jax.random.split(key, depth + 1)
    x = jax.random.normal(keys[0], (B, L, C), dtype=jnp.float32)
    blocks = [init_block_params(keys[i + 1], C, num_heads, min(window_size, L), hidden)
              for i in range(depth)]

    out = jax.block_until_ready(basic_layer_forward(x, blocks, window_size, num_heads))
    ref = basic_layer_ref(x, blocks, window_size, num_heads)

    assert out.shape == (B, L, C)
    max_err = float(jnp.max(jnp.abs(out - ref)))
    assert max_err < 1e-4, f"mismatch vs reference: {max_err}"
    print("KERNEL_OK")
</pallas_src>

<mosaic_0001>
module attributes {stable_mosaic.version = 11 : i64} {
  func.func @basic_layer_kernel(%arg0: i32, %arg1: memref<16x32xf32, #tpu.memory_space<vmem>>, %arg2: memref<1x32x96xf32, #tpu.memory_space<vmem>>, %arg3: memref<1x1x96xf32, #tpu.memory_space<vmem>>, %arg4: memref<1x1x4xf32, #tpu.memory_space<vmem>>, %arg5: memref<1x4x16x16xf32, #tpu.memory_space<vmem>>, %arg6: memref<1x32x32xf32, #tpu.memory_space<vmem>>, %arg7: memref<1x1x32xf32, #tpu.memory_space<vmem>>, %arg8: memref<1x1x32xf32, #tpu.memory_space<vmem>>, %arg9: memref<1x1x32xf32, #tpu.memory_space<vmem>>, %arg10: memref<1x32x128xf32, #tpu.memory_space<vmem>>, %arg11: memref<1x1x128xf32, #tpu.memory_space<vmem>>, %arg12: memref<1x128x32xf32, #tpu.memory_space<vmem>>, %arg13: memref<1x1x32xf32, #tpu.memory_space<vmem>>, %arg14: memref<1x1x32xf32, #tpu.memory_space<vmem>>, %arg15: memref<1x1x32xf32, #tpu.memory_space<vmem>>, %arg16: memref<16x32xf32, #tpu.memory_space<vmem>>) attributes {dimension_semantics = [#tpu.dimension_semantics<arbitrary>], iteration_bounds = array<i64: 2>, scalar_prefetch = 0 : i64, scratch_operands = 0 : i64, tpu.core_type = #tpu.core_type<tc>, window_params = [{pipeline_mode = #tpu.pipeline_mode<synchronous>, transform_indices = @transform_0, window_bounds = array<i64: 16, 32>}, {transform_indices = @transform_1, window_bounds = array<i64: 1, 32, 96>}, {transform_indices = @transform_2, window_bounds = array<i64: 1, 1, 96>}, {transform_indices = @transform_3, window_bounds = array<i64: 1, 1, 4>}, {transform_indices = @transform_4, window_bounds = array<i64: 1, 4, 16, 16>}, {transform_indices = @transform_5, window_bounds = array<i64: 1, 32, 32>}, {transform_indices = @transform_6, window_bounds = array<i64: 1, 1, 32>}, {transform_indices = @transform_7, window_bounds = array<i64: 1, 1, 32>}, {transform_indices = @transform_8, window_bounds = array<i64: 1, 1, 32>}, {transform_indices = @transform_9, window_bounds = array<i64: 1, 32, 128>}, {transform_indices = @transform_10, window_bounds = array<i64: 1, 1, 128>}, {transform_indices = @transform_11, window_bounds = array<i64: 1, 128, 32>}, {transform_indices = @transform_12, window_bounds = array<i64: 1, 1, 32>}, {transform_indices = @transform_13, window_bounds = array<i64: 1, 1, 32>}, {transform_indices = @transform_14, window_bounds = array<i64: 1, 1, 32>}, {pipeline_mode = #tpu.pipeline_mode<synchronous>, transform_indices = @transform_15, window_bounds = array<i64: 16, 32>}]} {
    %c0_i32 = arith.constant 0 : i32
    %0 = arith.cmpi eq, %arg0, %c0_i32 : i32
    %1 = arith.extui %0 : i1 to i32
    %c0_i32_0 = arith.constant 0 : i32
    %2 = arith.cmpi ne, %1, %c0_i32_0 : i32
    scf.if %2 {
      %c0_117 = arith.constant 0 : index
      %c0_118 = arith.constant 0 : index
      %282 = vector.load %arg1[%c0_117, %c0_118] : memref<16x32xf32, #tpu.memory_space<vmem>>, vector<16x32xf32>
      %c0_119 = arith.constant 0 : index
      %c0_120 = arith.constant 0 : index
      %283 = vector.load %arg16[%c0_119, %c0_120] : memref<16x32xf32, #tpu.memory_space<vmem>>, vector<16x32xf32>
      tpu.vector_store %arg16[%c0_119, %c0_120], %282 {strides = array<i32>} : memref<16x32xf32, #tpu.memory_space<vmem>>, vector<16x32xf32>,
    } else {
    }
    %c0 = arith.constant 0 : index
    %c0_1 = arith.constant 0 : index
    %3 = vector.load %arg16[%c0, %c0_1] : memref<16x32xf32, #tpu.memory_space<vmem>>, vector<16x32xf32>
    %c0_2 = arith.constant 0 : index
    %c0_3 = arith.constant 0 : index
    %c0_4 = arith.constant 0 : index
    %4 = vector.load %arg2[%c0_2, %c0_3, %c0_4] : memref<1x32x96xf32, #tpu.memory_space<vmem>>, vector<1x32x96xf32>
    %5 = vector.shape_cast %4 : vector<1x32x96xf32> to vector<32x96xf32>
    %cst = arith.constant dense<0.000000e+00> : vector<16x96xf32>
    %6 = tpu.matmul %3, %5, %cst {dimension_numbers = #tpu.dot_dimension_numbers<[1], [0], [0], [1], [0, 0, 1, 1], [], []>} : vector<16x32xf32>, vector<32x96xf32>, vector<16x96xf32> -> vector<16x96xf32>
    %c0_5 = arith.constant 0 : index
    %c0_6 = arith.constant 0 : index
    %c0_7 = arith.constant 0 : index
    %7 = vector.load %arg3[%c0_5, %c0_6, %c0_7] : memref<1x1x96xf32, #tpu.memory_space<vmem>>, vector<1x1x96xf32>
    %8 = vector.shape_cast %7 : vector<1x1x96xf32> to vector<1x96xf32>
    %9 = vector.broadcast %8 : vector<1x96xf32> to vector<16x96xf32>
    %10 = arith.addf %6, %9 : vector<16x96xf32>
    %11 = vector.extract_strided_slice %10 {offsets = [0, 0], sizes = [16, 32], strides = [1, 1]} : vector<16x96xf32> to vector<16x32xf32>
    %12 = vector.extract_strided_slice %10 {offsets = [0, 32], sizes = [16, 32], strides = [1, 1]} : vector<16x96xf32> to vector<16x32xf32>
    %13 = vector.extract_strided_slice %10 {offsets = [0, 64], sizes = [16, 32], strides = [1, 1]} : vector<16x96xf32> to vector<16x32xf32>
    %c0_8 = arith.constant 0 : index
    %c0_9 = arith.constant 0 : index
    %c0_10 = arith.constant 0 : index
    %14 = vector.load %arg4[%c0_8, %c0_9, %c0_10] : memref<1x1x4xf32, #tpu.memory_space<vmem>>, vector<1x1x4xf32>
    %15 = vector.shape_cast %14 : vector<1x1x4xf32> to vector<1x4xf32>
    %16 = vector.extract_strided_slice %11 {offsets = [0, 0], sizes = [16, 8], strides = [1, 1]} : vector<16x32xf32> to vector<16x8xf32>
    %17 = vector.extract_strided_slice %12 {offsets = [0, 0], sizes = [16, 8], strides = [1, 1]} : vector<16x32xf32> to vector<16x8xf32>
    %18 = vector.extract_strided_slice %13 {offsets = [0, 0], sizes = [16, 8], strides = [1, 1]} : vector<16x32xf32> to vector<16x8xf32>
    %19 = arith.mulf %16, %16 : vector<16x8xf32>
    %cst_11 = arith.constant dense<0.000000e+00> : vector<16xf32>
    %20 = vector.multi_reduction <add>, %19, %cst_11 [1] : vector<16x8xf32> to vector<16xf32>
    %21 = vector.shape_cast %20 : vector<16xf32> to vector<16x1xf32>
    %cst_12 = arith.constant 1.000000e-24 : f32
    %22 = vector.broadcast %cst_12 : f32 to vector<16x1xf32>
    %23 = arith.maximumf %21, %22 : vector<16x1xf32>
    %24 = math.rsqrt %23 : vector<16x1xf32>
    %25 = vector.broadcast %24 : vector<16x1xf32> to vector<16x8xf32>
    %26 = arith.mulf %16, %25 : vector<16x8xf32>
    %27 = arith.mulf %17, %17 : vector<16x8xf32>
    %cst_13 = arith.constant dense<0.000000e+00> : vector<16xf32>
    %28 = vector.multi_reduction <add>, %27, %cst_13 [1] : vector<16x8xf32> to vector<16xf32>
    %29 = vector.shape_cast %28 : vector<16xf32> to vector<16x1xf32>
    %cst_14 = arith.constant 1.000000e-24 : f32
    %30 = vector.broadcast %cst_14 : f32 to vector<16x1xf32>
    %31 = arith.maximumf %29, %30 : vector<16x1xf32>
    %32 = math.rsqrt %31 : vector<16x1xf32>
    %33 = vector.broadcast %32 : vector<16x1xf32> to vector<16x8xf32>
    %34 = arith.mulf %17, %33 : vector<16x8xf32>
    %35 = tpu.transpose %34, [1, 0] : vector<16x8xf32> -> vector<8x16xf32>
    %cst_15 = arith.constant dense<0.000000e+00> : vector<16x16xf32>
    %36 = tpu.matmul %26, %35, %cst_15 {dimension_numbers = #tpu.dot_dimension_numbers<[1], [0], [0], [1], [0, 0, 1, 1], [], []>} : vector<16x8xf32>, vector<8x16xf32>, vector<16x16xf32> -> vector<16x16xf32>
    %37 = vector.extract_strided_slice %15 {offsets = [0, 0], sizes = [1, 1], strides = [1, 1]} : vector<1x4xf32> to vector<1x1xf32>
    %38 = vector.broadcast %37 : vector<1x1xf32> to vector<16x16xf32>
    %39 = arith.mulf %36, %38 : vector<16x16xf32>
    %c0_16 = arith.constant 0 : index
    %c0_17 = arith.constant 0 : index
    %c0_18 = arith.constant 0 : index
    %c0_19 = arith.constant 0 : index
    %40 = vector.load %arg5[%c0_16, %c0_17, %c0_18, %c0_19] : memref<1x4x16x16xf32, #tpu.memory_space<vmem>>, vector<1x1x16x16xf32>
    %41 = vector.shape_cast %40 : vector<1x1x16x16xf32> to vector<16x16xf32>
    %42 = arith.addf %39, %41 : vector<16x16xf32>
    %cst_20 = arith.constant dense<0xFF800000> : vector<16xf32>
    %43 = vector.multi_reduction <maximumf>, %42, %cst_20 [1] : vector<16x16xf32> to vector<16xf32>
    %44 = vector.shape_cast %43 : vector<16xf32> to vector<16x1xf32>
    %45 = vector.broadcast %44 : vector<16x1xf32> to vector<16x16xf32>
    %46 = arith.subf %42, %45 : vector<16x16xf32>
    %47 = math.exp %46 : vector<16x16xf32>
    %cst_21 = arith.constant dense<0.000000e+00> : vector<16xf32>
    %48 = vector.multi_reduction <add>, %47, %cst_21 [1] : vector<16x16xf32> to vector<16xf32>
    %49 = vector.shape_cast %48 : vector<16xf32> to vector<16x1xf32>
    %50 = vector.broadcast %49 : vector<16x1xf32> to vector<16x16xf32>
    %51 = arith.divf %47, %50 : vector<16x16xf32>
    %cst_22 = arith.constant dense<0.000000e+00> : vector<16x8xf32>
    %52 = tpu.matmul %51, %18, %cst_22 {dimension_numbers = #tpu.dot_dimension_numbers<[1], [0], [0], [1], [0, 0, 1, 1], [], []>} : vector<16x16xf32>, vector<16x8xf32>, vector<16x8xf32> -> vector<16x8xf32>
    %53 = vector.extract_strided_slice %11 {offsets = [0, 8], sizes = [16, 8], strides = [1, 1]} : vector<16x32xf32> to vector<16x8xf32>
    %54 = vector.extract_strided_slice %12 {offsets = [0, 8], sizes = [16, 8], strides = [1, 1]} : vector<16x32xf32> to vector<16x8xf32>
    %55 = vector.extract_strided_slice %13 {offsets = [0, 8], sizes = [16, 8], strides = [1, 1]} : vector<16x32xf32> to vector<16x8xf32>
    %56 = arith.mulf %53, %53 : vector<16x8xf32>
    %cst_23 = arith.constant dense<0.000000e+00> : vector<16xf32>
    %57 = vector.multi_reduction <add>, %56, %cst_23 [1] : vector<16x8xf32> to vector<16xf32>
    %58 = vector.shape_cast %57 : vector<16xf32> to vector<16x1xf32>
    %cst_24 = arith.constant 1.000000e-24 : f32
    %59 = vector.broadcast %cst_24 : f32 to vector<16x1xf32>
    %60 = arith.maximumf %58, %59 : vector<16x1xf32>
    %61 = math.rsqrt %60 : vector<16x1xf32>
    %62 = vector.broadcast %61 : vector<16x1xf32> to vector<16x8xf32>
    %63 = arith.mulf %53, %62 : vector<16x8xf32>
    %64 = arith.mulf %54, %54 : vector<16x8xf32>
    %cst_25 = arith.constant dense<0.000000e+00> : vector<16xf32>
    %65 = vector.multi_reduction <add>, %64, %cst_25 [1] : vector<16x8xf32> to vector<16xf32>
    %66 = vector.shape_cast %65 : vector<16xf32> to vector<16x1xf32>
    %cst_26 = arith.constant 1.000000e-24 : f32
    %67 = vector.broadcast %cst_26 : f32 to vector<16x1xf32>
    %68 = arith.maximumf %66, %67 : vector<16x1xf32>
    %69 = math.rsqrt %68 : vector<16x1xf32>
    %70 = vector.broadcast %69 : vector<16x1xf32> to vector<16x8xf32>
    %71 = arith.mulf %54, %70 : vector<16x8xf32>
    %72 = tpu.transpose %71, [1, 0] : vector<16x8xf32> -> vector<8x16xf32>
    %cst_27 = arith.constant dense<0.000000e+00> : vector<16x16xf32>
    %73 = tpu.matmul %63, %72, %cst_27 {dimension_numbers = #tpu.dot_dimension_numbers<[1], [0], [0], [1], [0, 0, 1, 1], [], []>} : vector<16x8xf32>, vector<8x16xf32>, vector<16x16xf32> -> vector<16x16xf32>
    %74 = vector.extract_strided_slice %15 {offsets = [0, 1], sizes = [1, 1], strides = [1, 1]} : vector<1x4xf32> to vector<1x1xf32>
    %75 = vector.broadcast %74 : vector<1x1xf32> to vector<16x16xf32>
    %76 = arith.mulf %73, %75 : vector<16x16xf32>
    %c0_28 = arith.constant 0 : index
    %c1 = arith.constant 1 : index
    %c0_29 = arith.constant 0 : index
    %c0_30 = arith.constant 0 : index
    %77 = vector.load %arg5[%c0_28, %c1, %c0_29, %c0_30] : memref<1x4x16x16xf32, #tpu.memory_space<vmem>>, vector<1x1x16x16xf32>
    %78 = vector.shape_cast %77 : vector<1x1x16x16xf32> to vector<16x16xf32>
    %79 = arith.addf %76, %78 : vector<16x16xf32>
    %cst_31 = arith.constant dense<0xFF800000> : vector<16xf32>
    %80 = vector.multi_reduction <maximumf>, %79, %cst_31 [1] : vector<16x16xf32> to vector<16xf32>
    %81 = vector.shape_cast %80 : vector<16xf32> to vector<16x1xf32>
    %82 = vector.broadcast %81 : vector<16x1xf32> to vector<16x16xf32>
    %83 = arith.subf %79, %82 : vector<16x16xf32>
    %84 = math.exp %83 : vector<16x16xf32>
    %cst_32 = arith.constant dense<0.000000e+00> : vector<16xf32>
    %85 = vector.multi_reduction <add>, %84, %cst_32 [1] : vector<16x16xf32> to vector<16xf32>
    %86 = vector.shape_cast %85 : vector<16xf32> to vector<16x1xf32>
    %87 = vector.broadcast %86 : vector<16x1xf32> to vector<16x16xf32>
    %88 = arith.divf %84, %87 : vector<16x16xf32>
    %cst_33 = arith.constant dense<0.000000e+00> : vector<16x8xf32>
    %89 = tpu.matmul %88, %55, %cst_33 {dimension_numbers = #tpu.dot_dimension_numbers<[1], [0], [0], [1], [0, 0, 1, 1], [], []>} : vector<16x16xf32>, vector<16x8xf32>, vector<16x8xf32> -> vector<16x8xf32>
    %90 = vector.extract_strided_slice %11 {offsets = [0, 16], sizes = [16, 8], strides = [1, 1]} : vector<16x32xf32> to vector<16x8xf32>
    %91 = vector.extract_strided_slice %12 {offsets = [0, 16], sizes = [16, 8], strides = [1, 1]} : vector<16x32xf32> to vector<16x8xf32>
    %92 = vector.extract_strided_slice %13 {offsets = [0, 16], sizes = [16, 8], strides = [1, 1]} : vector<16x32xf32> to vector<16x8xf32>
    %93 = arith.mulf %90, %90 : vector<16x8xf32>
    %cst_34 = arith.constant dense<0.000000e+00> : vector<16xf32>
    %94 = vector.multi_reduction <add>, %93, %cst_34 [1] : vector<16x8xf32> to vector<16xf32>
    %95 = vector.shape_cast %94 : vector<16xf32> to vector<16x1xf32>
    %cst_35 = arith.constant 1.000000e-24 : f32
    %96 = vector.broadcast %cst_35 : f32 to vector<16x1xf32>
    %97 = arith.maximumf %95, %96 : vector<16x1xf32>
    %98 = math.rsqrt %97 : vector<16x1xf32>
    %99 = vector.broadcast %98 : vector<16x1xf32> to vector<16x8xf32>
    %100 = arith.mulf %90, %99 : vector<16x8xf32>
    %101 = arith.mulf %91, %91 : vector<16x8xf32>
    %cst_36 = arith.constant dense<0.000000e+00> : vector<16xf32>
    %102 = vector.multi_reduction <add>, %101, %cst_36 [1] : vector<16x8xf32> to vector<16xf32>
    %103 = vector.shape_cast %102 : vector<16xf32> to vector<16x1xf32>
    %cst_37 = arith.constant 1.000000e-24 : f32
    %104 = vector.broadcast %cst_37 : f32 to vector<16x1xf32>
    %105 = arith.maximumf %103, %104 : vector<16x1xf32>
    %106 = math.rsqrt %105 : vector<16x1xf32>
    %107 = vector.broadcast %106 : vector<16x1xf32> to vector<16x8xf32>
    %108 = arith.mulf %91, %107 : vector<16x8xf32>
    %109 = tpu.transpose %108, [1, 0] : vector<16x8xf32> -> vector<8x16xf32>
    %cst_38 = arith.constant dense<0.000000e+00> : vector<16x16xf32>
    %110 = tpu.matmul %100, %109, %cst_38 {dimension_numbers = #tpu.dot_dimension_numbers<[1], [0], [0], [1], [0, 0, 1, 1], [], []>} : vector<16x8xf32>, vector<8x16xf32>, vector<16x16xf32> -> vector<16x16xf32>
    %111 = vector.extract_strided_slice %15 {offsets = [0, 2], sizes = [1, 1], strides = [1, 1]} : vector<1x4xf32> to vector<1x1xf32>
    %112 = vector.broadcast %111 : vector<1x1xf32> to vector<16x16xf32>
    %113 = arith.mulf %110, %112 : vector<16x16xf32>
    %c0_39 = arith.constant 0 : index
    %c2 = arith.constant 2 : index
    %c0_40 = arith.constant 0 : index
    %c0_41 = arith.constant 0 : index
    %114 = vector.load %arg5[%c0_39, %c2, %c0_40, %c0_41] : memref<1x4x16x16xf32, #tpu.memory_space<vmem>>, vector<1x1x16x16xf32>
    %115 = vector.shape_cast %114 : vector<1x1x16x16xf32> to vector<16x16xf32>
    %116 = arith.addf %113, %115 : vector<16x16xf32>
    %cst_42 = arith.constant dense<0xFF800000> : vector<16xf32>
    %117 = vector.multi_reduction <maximumf>, %116, %cst_42 [1] : vector<16x16xf32> to vector<16xf32>
    %118 = vector.shape_cast %117 : vector<16xf32> to vector<16x1xf32>
    %119 = vector.broadcast %118 : vector<16x1xf32> to vector<16x16xf32>
    %120 = arith.subf %116, %119 : vector<16x16xf32>
    %121 = math.exp %120 : vector<16x16xf32>
    %cst_43 = arith.constant dense<0.000000e+00> : vector<16xf32>
    %122 = vector.multi_reduction <add>, %121, %cst_43 [1] : vector<16x16xf32> to vector<16xf32>
    %123 = vector.shape_cast %122 : vector<16xf32> to vector<16x1xf32>
    %124 = vector.broadcast %123 : vector<16x1xf32> to vector<16x16xf32>
    %125 = arith.divf %121, %124 : vector<16x16xf32>
    %cst_44 = arith.constant dense<0.000000e+00> : vector<16x8xf32>
    %126 = tpu.matmul %125, %92, %cst_44 {dimension_numbers = #tpu.dot_dimension_numbers<[1], [0], [0], [1], [0, 0, 1, 1], [], []>} : vector<16x16xf32>, vector<16x8xf32>, vector<16x8xf32> -> vector<16x8xf32>
    %127 = vector.extract_strided_slice %11 {offsets = [0, 24], sizes = [16, 8], strides = [1, 1]} : vector<16x32xf32> to vector<16x8xf32>
    %128 = vector.extract_strided_slice %12 {offsets = [0, 24], sizes = [16, 8], strides = [1, 1]} : vector<16x32xf32> to vector<16x8xf32>
    %129 = vector.extract_strided_slice %13 {offsets = [0, 24], sizes = [16, 8], strides = [1, 1]} : vector<16x32xf32> to vector<16x8xf32>
    %130 = arith.mulf %127, %127 : vector<16x8xf32>
    %cst_45 = arith.constant dense<0.000000e+00> : vector<16xf32>
    %131 = vector.multi_reduction <add>, %130, %cst_45 [1] : vector<16x8xf32> to vector<16xf32>
    %132 = vector.shape_cast %131 : vector<16xf32> to vector<16x1xf32>
    %cst_46 = arith.constant 1.000000e-24 : f32
    %133 = vector.broadcast %cst_46 : f32 to vector<16x1xf32>
    %134 = arith.maximumf %132, %133 : vector<16x1xf32>
    %135 = math.rsqrt %134 : vector<16x1xf32>
    %136 = vector.broadcast %135 : vector<16x1xf32> to vector<16x8xf32>
    %137 = arith.mulf %127, %136 : vector<16x8xf32>
    %138 = arith.mulf %128, %128 : vector<16x8xf32>
    %cst_47 = arith.constant dense<0.000000e+00> : vector<16xf32>
    %139 = vector.multi_reduction <add>, %138, %cst_47 [1] : vector<16x8xf32> to vector<16xf32>
    %140 = vector.shape_cast %139 : vector<16xf32> to vector<16x1xf32>
    %cst_48 = arith.constant 1.000000e-24 : f32
    %141 = vector.broadcast %cst_48 : f32 to vector<16x1xf32>
    %142 = arith.maximumf %140, %141 : vector<16x1xf32>
    %143 = math.rsqrt %142 : vector<16x1xf32>
    %144 = vector.broadcast %143 : vector<16x1xf32> to vector<16x8xf32>
    %145 = arith.mulf %128, %144 : vector<16x8xf32>
    %146 = tpu.transpose %145, [1, 0] : vector<16x8xf32> -> vector<8x16xf32>
    %cst_49 = arith.constant dense<0.000000e+00> : vector<16x16xf32>
    %147 = tpu.matmul %137, %146, %cst_49 {dimension_numbers = #tpu.dot_dimension_numbers<[1], [0], [0], [1], [0, 0, 1, 1], [], []>} : vector<16x8xf32>, vector<8x16xf32>, vector<16x16xf32> -> vector<16x16xf32>
    %148 = vector.extract_strided_slice %15 {offsets = [0, 3], sizes = [1, 1], strides = [1, 1]} : vector<1x4xf32> to vector<1x1xf32>
    %149 = vector.broadcast %148 : vector<1x1xf32> to vector<16x16xf32>
    %150 = arith.mulf %147, %149 : vector<16x16xf32>
    %c0_50 = arith.constant 0 : index
    %c3 = arith.constant 3 : index
    %c0_51 = arith.constant 0 : index
    %c0_52 = arith.constant 0 : index
    %151 = vector.load %arg5[%c0_50, %c3, %c0_51, %c0_52] : memref<1x4x16x16xf32, #tpu.memory_space<vmem>>, vector<1x1x16x16xf32>
    %152 = vector.shape_cast %151 : vector<1x1x16x16xf32> to vector<16x16xf32>
    %153 = arith.addf %150, %152 : vector<16x16xf32>
    %cst_53 = arith.constant dense<0xFF800000> : vector<16xf32>
    %154 = vector.multi_reduction <maximumf>, %153, %cst_53 [1] : vector<16x16xf32> to vector<16xf32>
    %155 = vector.shape_cast %154 : vector<16xf32> to vector<16x1xf32>
    %156 = vector.broadcast %155 : vector<16x1xf32> to vector<16x16xf32>
    %157 = arith.subf %153, %156 : vector<16x16xf32>
    %158 = math.exp %157 : vector<16x16xf32>
    %cst_54 = arith.constant dense<0.000000e+00> : vector<16xf32>
    %159 = vector.multi_reduction <add>, %158, %cst_54 [1] : vector<16x16xf32> to vector<16xf32>
    %160 = vector.shape_cast %159 : vector<16xf32> to vector<16x1xf32>
    %161 = vector.broadcast %160 : vector<16x1xf32> to vector<16x16xf32>
    %162 = arith.divf %158, %161 : vector<16x16xf32>
    %cst_55 = arith.constant dense<0.000000e+00> : vector<16x8xf32>
    %163 = tpu.matmul %162, %129, %cst_55 {dimension_numbers = #tpu.dot_dimension_numbers<[1], [0], [0], [1], [0, 0, 1, 1], [], []>} : vector<16x16xf32>, vector<16x8xf32>, vector<16x8xf32> -> vector<16x8xf32>
    %164 = tpu.concatenate %52, %89, %126, %163 in 1 : vector<16x8xf32>, vector<16x8xf32>, vector<16x8xf32>, vector<16x8xf32> -> vector<16x32xf32>
    %c0_56 = arith.constant 0 : index
    %c0_57 = arith.constant 0 : index
    %c0_58 = arith.constant 0 : index
    %165 = vector.load %arg6[%c0_56, %c0_57, %c0_58] : memref<1x32x32xf32, #tpu.memory_space<vmem>>, vector<1x32x32xf32>
    %166 = vector.shape_cast %165 : vector<1x32x32xf32> to vector<32x32xf32>
    %cst_59 = arith.constant dense<0.000000e+00> : vector<16x32xf32>
    %167 = tpu.matmul %164, %166, %cst_59 {dimension_numbers = #tpu.dot_dimension_numbers<[1], [0], [0], [1], [0, 0, 1, 1], [], []>} : vector<16x32xf32>, vector<32x32xf32>, vector<16x32xf32> -> vector<16x32xf32>
    %c0_60 = arith.constant 0 : index
    %c0_61 = arith.constant 0 : index
    %c0_62 = arith.constant 0 : index
    %168 = vector.load %arg7[%c0_60, %c0_61, %c0_62] : memref<1x1x32xf32, #tpu.memory_space<vmem>>, vector<1x1x32xf32>
    %169 = vector.shape_cast %168 : vector<1x1x32xf32> to vector<1x32xf32>
    %170 = vector.broadcast %169 : vector<1x32xf32> to vector<16x32xf32>
    %171 = arith.addf %167, %170 : vector<16x32xf32>
    %c0_63 = arith.constant 0 : index
    %c0_64 = arith.constant 0 : index
    %c0_65 = arith.constant 0 : index
    %172 = vector.load %arg8[%c0_63, %c0_64, %c0_65] : memref<1x1x32xf32, #tpu.memory_space<vmem>>, vector<1x1x32xf32>
    %173 = vector.shape_cast %172 : vector<1x1x32xf32> to vector<1x32xf32>
    %c0_66 = arith.constant 0 : index
    %c0_67 = arith.constant 0 : index
    %c0_68 = arith.constant 0 : index
    %174 = vector.load %arg9[%c0_66, %c0_67, %c0_68] : memref<1x1x32xf32, #tpu.memory_space<vmem>>, vector<1x1x32xf32>
    %175 = vector.shape_cast %174 : vector<1x1x32xf32> to vector<1x32xf32>
    %cst_69 = arith.constant dense<0.000000e+00> : vector<16xf32>
    %176 = vector.multi_reduction <add>, %171, %cst_69 [1] : vector<16x32xf32> to vector<16xf32>
    %177 = vector.shape_cast %176 : vector<16xf32> to vector<16x1xf32>
    %cst_70 = arith.constant 3.200000e+01 : f32
    %178 = vector.broadcast %cst_70 : f32 to vector<16x1xf32>
    %179 = arith.divf %177, %178 : vector<16x1xf32>
    %180 = vector.broadcast %179 : vector<16x1xf32> to vector<16x32xf32>
    %181 = arith.subf %171, %180 : vector<16x32xf32>
    %182 = arith.mulf %181, %181 : vector<16x32xf32>
    %cst_71 = arith.constant dense<0.000000e+00> : vector<16xf32>
    %183 = vector.multi_reduction <add>, %182, %cst_71 [1] : vector<16x32xf32> to vector<16xf32>
    %184 = vector.shape_cast %183 : vector<16xf32> to vector<16x1xf32>
    %cst_72 = arith.constant 3.200000e+01 : f32
    %185 = vector.broadcast %cst_72 : f32 to vector<16x1xf32>
    %186 = arith.divf %184, %185 : vector<16x1xf32>
    %187 = vector.broadcast %179 : vector<16x1xf32> to vector<16x32xf32>
    %188 = arith.subf %171, %187 : vector<16x32xf32>
    %cst_73 = arith.constant 9.99999974E-6 : f32
    %189 = vector.broadcast %cst_73 : f32 to vector<16x1xf32>
    %190 = arith.addf %186, %189 : vector<16x1xf32>
    %191 = math.rsqrt %190 : vector<16x1xf32>
    %192 = vector.broadcast %191 : vector<16x1xf32> to vector<16x32xf32>
    %193 = arith.mulf %188, %192 : vector<16x32xf32>
    %194 = vector.broadcast %173 : vector<1x32xf32> to vector<16x32xf32>
    %195 = arith.mulf %193, %194 : vector<16x32xf32>
    %196 = vector.broadcast %175 : vector<1x32xf32> to vector<16x32xf32>
    %197 = arith.addf %195, %196 : vector<16x32xf32>
    %198 = arith.addf %3, %197 : vector<16x32xf32>
    %c0_74 = arith.constant 0 : index
    %c0_75 = arith.constant 0 : index
    %c0_76 = arith.constant 0 : index
    %199 = vector.load %arg10[%c0_74, %c0_75, %c0_76] : memref<1x32x128xf32, #tpu.memory_space<vmem>>, vector<1x32x128xf32>
    %200 = vector.shape_cast %199 : vector<1x32x128xf32> to vector<32x128xf32>
    %cst_77 = arith.constant dense<0.000000e+00> : vector<16x128xf32>
    %201 = tpu.matmul %198, %200, %cst_77 {dimension_numbers = #tpu.dot_dimension_numbers<[1], [0], [0], [1], [0, 0, 1, 1], [], []>} : vector<16x32xf32>, vector<32x128xf32>, vector<16x128xf32> -> vector<16x128xf32>
    %c0_78 = arith.constant 0 : index
    %c0_79 = arith.constant 0 : index
    %c0_80 = arith.constant 0 : index
    %202 = vector.load %arg11[%c0_78, %c0_79, %c0_80] : memref<1x1x128xf32, #tpu.memory_space<vmem>>, vector<1x1x128xf32>
    %203 = vector.shape_cast %202 : vector<1x1x128xf32> to vector<1x128xf32>
    %204 = vector.broadcast %203 : vector<1x128xf32> to vector<16x128xf32>
    %205 = arith.addf %201, %204 : vector<16x128xf32>
    %cst_81 = arith.constant 5.000000e-01 : f32
    %206 = vector.broadcast %cst_81 : f32 to vector<16x128xf32>
    %207 = arith.mulf %206, %205 : vector<16x128xf32>
    %cst_82 = arith.constant 0.707106769 : f32
    %208 = vector.broadcast %cst_82 : f32 to vector<16x128xf32>
    %209 = arith.mulf %205, %208 : vector<16x128xf32>
    %cst_83 = arith.constant 0.000000e+00 : f32
    %210 = vector.broadcast %cst_83 : f32 to vector<16x128xf32>
    %211 = arith.cmpf oge, %209, %210 : vector<16x128xf32>
    %cst_84 = arith.constant 1.000000e+00 : f32
    %cst_85 = arith.constant -1.000000e+00 : f32
    %212 = vector.broadcast %cst_84 : f32 to vector<16x128xf32>
    %213 = vector.broadcast %cst_85 : f32 to vector<16x128xf32>
    %214 = arith.select %211, %212, %213 : vector<16x128xi1>, vector<16x128xf32>
    %215 = math.absf %209 : vector<16x128xf32>
    %cst_86 = arith.constant 0.327591091 : f32
    %216 = vector.broadcast %cst_86 : f32 to vector<16x128xf32>
    %217 = arith.mulf %216, %215 : vector<16x128xf32>
    %cst_87 = arith.constant 1.000000e+00 : f32
    %218 = vector.broadcast %cst_87 : f32 to vector<16x128xf32>
    %219 = arith.addf %218, %217 : vector<16x128xf32>
    %cst_88 = arith.constant 1.000000e+00 : f32
    %220 = vector.broadcast %cst_88 : f32 to vector<16x128xf32>
    %221 = arith.divf %220, %219 : vector<16x128xf32>
    %cst_89 = arith.constant 1.06140542 : f32
    %222 = vector.broadcast %cst_89 : f32 to vector<16x128xf32>
    %223 = arith.mulf %222, %221 : vector<16x128xf32>
    %cst_90 = arith.constant -1.45315206 : f32
    %224 = vector.broadcast %cst_90 : f32 to vector<16x128xf32>
    %225 = arith.addf %223, %224 : vector<16x128xf32>
    %226 = arith.mulf %225, %221 : vector<16x128xf32>
    %cst_91 = arith.constant 1.42141378 : f32
    %227 = vector.broadcast %cst_91 : f32 to vector<16x128xf32>
    %228 = arith.addf %226, %227 : vector<16x128xf32>
    %229 = arith.mulf %228, %221 : vector<16x128xf32>
    %cst_92 = arith.constant -0.284496725 : f32
    %230 = vector.broadcast %cst_92 : f32 to vector<16x128xf32>
    %231 = arith.addf %229, %230 : vector<16x128xf32>
    %232 = arith.mulf %231, %221 : vector<16x128xf32>
    %cst_93 = arith.constant 0.254829586 : f32
    %233 = vector.broadcast %cst_93 : f32 to vector<16x128xf32>
    %234 = arith.addf %232, %233 : vector<16x128xf32>
    %235 = arith.mulf %234, %221 : vector<16x128xf32>
    %cst_94 = arith.constant 0.000000e+00 : f32
    %236 = vector.broadcast %cst_94 : f32 to vector<16x128xf32>
    %237 = arith.subf %236, %215 : vector<16x128xf32>
    %238 = arith.mulf %237, %215 : vector<16x128xf32>
    %239 = math.exp %238 : vector<16x128xf32>
    %240 = arith.mulf %235, %239 : vector<16x128xf32>
    %cst_95 = arith.constant 1.000000e+00 : f32
    %241 = vector.broadcast %cst_95 : f32 to vector<16x128xf32>
    %242 = arith.subf %241, %240 : vector<16x128xf32>
    %243 = arith.mulf %214, %242 : vector<16x128xf32>
    %cst_96 = arith.constant 1.000000e+00 : f32
    %244 = vector.broadcast %cst_96 : f32 to vector<16x128xf32>
    %245 = arith.addf %244, %243 : vector<16x128xf32>
    %246 = arith.mulf %207, %245 : vector<16x128xf32>
    %c0_97 = arith.constant 0 : index
    %c0_98 = arith.constant 0 : index
    %c0_99 = arith.constant 0 : index
    %247 = vector.load %arg12[%c0_97, %c0_98, %c0_99] : memref<1x128x32xf32, #tpu.memory_space<vmem>>, vector<1x128x32xf32>
    %248 = vector.shape_cast %247 : vector<1x128x32xf32> to vector<128x32xf32>
    %cst_100 = arith.constant dense<0.000000e+00> : vector<16x32xf32>
    %249 = tpu.matmul %246, %248, %cst_100 {dimension_numbers = #tpu.dot_dimension_numbers<[1], [0], [0], [1], [0, 0, 1, 1], [], []>} : vector<16x128xf32>, vector<128x32xf32>, vector<16x32xf32> -> vector<16x32xf32>
    %c0_101 = arith.constant 0 : index
    %c0_102 = arith.constant 0 : index
    %c0_103 = arith.constant 0 : index
    %250 = vector.load %arg13[%c0_101, %c0_102, %c0_103] : memref<1x1x32xf32, #tpu.memory_space<vmem>>, vector<1x1x32xf32>
    %251 = vector.shape_cast %250 : vector<1x1x32xf32> to vector<1x32xf32>
    %252 = vector.broadcast %251 : vector<1x32xf32> to vector<16x32xf32>
    %253 = arith.addf %249, %252 : vector<16x32xf32>
    %c0_104 = arith.constant 0 : index
    %c0_105 = arith.constant 0 : index
    %c0_106 = arith.constant 0 : index
    %254 = vector.load %arg14[%c0_104, %c0_105, %c0_106] : memref<1x1x32xf32, #tpu.memory_space<vmem>>, vector<1x1x32xf32>
    %255 = vector.shape_cast %254 : vector<1x1x32xf32> to vector<1x32xf32>
    %c0_107 = arith.constant 0 : index
    %c0_108 = arith.constant 0 : index
    %c0_109 = arith.constant 0 : index
    %256 = vector.load %arg15[%c0_107, %c0_108, %c0_109] : memref<1x1x32xf32, #tpu.memory_space<vmem>>, vector<1x1x32xf32>
    %257 = vector.shape_cast %256 : vector<1x1x32xf32> to vector<1x32xf32>
    %cst_110 = arith.constant dense<0.000000e+00> : vector<16xf32>
    %258 = vector.multi_reduction <add>, %253, %cst_110 [1] : vector<16x32xf32> to vector<16xf32>
    %259 = vector.shape_cast %258 : vector<16xf32> to vector<16x1xf32>
    %cst_111 = arith.constant 3.200000e+01 : f32
    %260 = vector.broadcast %cst_111 : f32 to vector<16x1xf32>
    %261 = arith.divf %259, %260 : vector<16x1xf32>
    %262 = vector.broadcast %261 : vector<16x1xf32> to vector<16x32xf32>
    %263 = arith.subf %253, %262 : vector<16x32xf32>
    %264 = arith.mulf %263, %263 : vector<16x32xf32>
    %cst_112 = arith.constant dense<0.000000e+00> : vector<16xf32>
    %265 = vector.multi_reduction <add>, %264, %cst_112 [1] : vector<16x32xf32> to vector<16xf32>
    %266 = vector.shape_cast %265 : vector<16xf32> to vector<16x1xf32>
    %cst_113 = arith.constant 3.200000e+01 : f32
    %267 = vector.broadcast %cst_113 : f32 to vector<16x1xf32>
    %268 = arith.divf %266, %267 : vector<16x1xf32>
    %269 = vector.broadcast %261 : vector<16x1xf32> to vector<16x32xf32>
    %270 = arith.subf %253, %269 : vector<16x32xf32>
    %cst_114 = arith.constant 9.99999974E-6 : f32
    %271 = vector.broadcast %cst_114 : f32 to vector<16x1xf32>
    %272 = arith.addf %268, %271 : vector<16x1xf32>
    %273 = math.rsqrt %272 : vector<16x1xf32>
    %274 = vector.broadcast %273 : vector<16x1xf32> to vector<16x32xf32>
    %275 = arith.mulf %270, %274 : vector<16x32xf32>
    %276 = vector.broadcast %255 : vector<1x32xf32> to vector<16x32xf32>
    %277 = arith.mulf %275, %276 : vector<16x32xf32>
    %278 = vector.broadcast %257 : vector<1x32xf32> to vector<16x32xf32>
    %279 = arith.addf %277, %278 : vector<16x32xf32>
    %280 = arith.addf %198, %279 : vector<16x32xf32>
    %c0_115 = arith.constant 0 : index
    %c0_116 = arith.constant 0 : index
    %281 = vector.load %arg16[%c0_115, %c0_116] : memref<16x32xf32, #tpu.memory_space<vmem>>, vector<16x32xf32>
    tpu.vector_store %arg16[%c0_115, %c0_116], %280 {strides = array<i32>} : memref<16x32xf32, #tpu.memory_space<vmem>>, vector<16x32xf32>,
    return
  }
  func.func @transform_0(%arg0: i32) -> (i32, i32) {
    %c0_i32 = arith.constant 0 : i32
    %c0_i32_0 = arith.constant 0 : i32
    %c0_i32_1 = arith.constant 0 : i32
    return %c0_i32, %c0_i32_0 : i32, i32
  }
  func.func @transform_1(%arg0: i32) -> (i32, i32, i32) {
    %c0_i32 = arith.constant 0 : i32
    %c0_i32_0 = arith.constant 0 : i32
    %c0_i32_1 = arith.constant 0 : i32
    return %arg0, %c0_i32, %c0_i32_0 : i32, i32, i32
  }
  func.func @transform_2(%arg0: i32) -> (i32, i32, i32) {
    %c0_i32 = arith.constant 0 : i32
    %c0_i32_0 = arith.constant 0 : i32
    %c0_i32_1 = arith.constant 0 : i32
    return %arg0, %c0_i32, %c0_i32_0 : i32, i32, i32
  }
  func.func @transform_3(%arg0: i32) -> (i32, i32, i32) {
    %c0_i32 = arith.constant 0 : i32
    %c0_i32_0 = arith.constant 0 : i32
    %c0_i32_1 = arith.constant 0 : i32
    return %arg0, %c0_i32, %c0_i32_0 : i32, i32, i32
  }
  func.func @transform_4(%arg0: i32) -> (i32, i32, i32, i32) {
    %c0_i32 = arith.constant 0 : i32
    %c0_i32_0 = arith.constant 0 : i32
    %c0_i32_1 = arith.constant 0 : i32
    %c0_i32_2 = arith.constant 0 : i32
    return %arg0, %c0_i32, %c0_i32_0, %c0_i32_1 : i32, i32, i32, i32
  }
  func.func @transform_5(%arg0: i32) -> (i32, i32, i32) {
    %c0_i32 = arith.constant 0 : i32
    %c0_i32_0 = arith.constant 0 : i32
    %c0_i32_1 = arith.constant 0 : i32
    return %arg0, %c0_i32, %c0_i32_0 : i32, i32, i32
  }
  func.func @transform_6(%arg0: i32) -> (i32, i32, i32) {
    %c0_i32 = arith.constant 0 : i32
    %c0_i32_0 = arith.constant 0 : i32
    %c0_i32_1 = arith.constant 0 : i32
    return %arg0, %c0_i32, %c0_i32_0 : i32, i32, i32
  }
  func.func @transform_7(%arg0: i32) -> (i32, i32, i32) {
    %c0_i32 = arith.constant 0 : i32
    %c0_i32_0 = arith.constant 0 : i32
    %c0_i32_1 = arith.constant 0 : i32
    return %arg0, %c0_i32, %c0_i32_0 : i32, i32, i32
  }
  func.func @transform_8(%arg0: i32) -> (i32, i32, i32) {
    %c0_i32 = arith.constant 0 : i32
    %c0_i32_0 = arith.constant 0 : i32
    %c0_i32_1 = arith.constant 0 : i32
    return %arg0, %c0_i32, %c0_i32_0 : i32, i32, i32
  }
  func.func @transform_9(%arg0: i32) -> (i32, i32, i32) {
    %c0_i32 = arith.constant 0 : i32
    %c0_i32_0 = arith.constant 0 : i32
    %c0_i32_1 = arith.constant 0 : i32
    return %arg0, %c0_i32, %c0_i32_0 : i32, i32, i32
  }
  func.func @transform_10(%arg0: i32) -> (i32, i32, i32) {
    %c0_i32 = arith.constant 0 : i32
    %c0_i32_0 = arith.constant 0 : i32
    %c0_i32_1 = arith.constant 0 : i32
    return %arg0, %c0_i32, %c0_i32_0 : i32, i32, i32
  }
  func.func @transform_11(%arg0: i32) -> (i32, i32, i32) {
    %c0_i32 = arith.constant 0 : i32
    %c0_i32_0 = arith.constant 0 : i32
    %c0_i32_1 = arith.constant 0 : i32
    return %arg0, %c0_i32, %c0_i32_0 : i32, i32, i32
  }
  func.func @transform_12(%arg0: i32) -> (i32, i32, i32) {
    %c0_i32 = arith.constant 0 : i32
    %c0_i32_0 = arith.constant 0 : i32
    %c0_i32_1 = arith.constant 0 : i32
    return %arg0, %c0_i32, %c0_i32_0 : i32, i32, i32
  }
  func.func @transform_13(%arg0: i32) -> (i32, i32, i32) {
    %c0_i32 = arith.constant 0 : i32
    %c0_i32_0 = arith.constant 0 : i32
    %c0_i32_1 = arith.constant 0 : i32
    return %arg0, %c0_i32, %c0_i32_0 : i32, i32, i32
  }
  func.func @transform_14(%arg0: i32) -> (i32, i32, i32) {
    %c0_i32 = arith.constant 0 : i32
    %c0_i32_0 = arith.constant 0 : i32
    %c0_i32_1 = arith.constant 0 : i32
    return %arg0, %c0_i32, %c0_i32_0 : i32, i32, i32
  }
  func.func @transform_15(%arg0: i32) -> (i32, i32) {
    %c0_i32 = arith.constant 0 : i32
    %c0_i32_0 = arith.constant 0 : i32
    %c0_i32_1 = arith.constant 0 : i32
    return %c0_i32, %c0_i32_0 : i32, i32
  }
}

</mosaic_0001>

<llo_original>
// kernel: tpu_custom_call.1
$region0: #{tpu_custom_call.1}
  #allocation0 [shape = 'u32[]', space=smem, size = 0x4, offset = 0x4, fixed_abs, tag = 'smem constant byte address 0x4 - core index']
  #allocation1 [shape = 'u32[144,128]{1,0:T(1,128)}', space=vmem, size = 0x12000, scoped, tag = 'internal scratch']
  %s0 = inlined_call_operand.hbm [shape: f32[16,32], index: 0, kind: input, shape index: {}]
  %s1 = inlined_call_operand.vmem [shape: f32[2,32,96], index: 1, kind: input, shape index: {}]
  %s2 = inlined_call_operand.vmem [shape: f32[2,1,96], index: 2, kind: input, shape index: {}]
  %s3 = inlined_call_operand.vmem [shape: f32[2,1,4], index: 3, kind: input, shape index: {}]
  %s4 = inlined_call_operand.vmem [shape: f32[2,4,16,16], index: 4, kind: input, shape index: {}]
  %s5 = inlined_call_operand.vmem [shape: f32[2,32,32], index: 5, kind: input, shape index: {}]
  %s6 = inlined_call_operand.vmem [shape: f32[2,1,32], index: 6, kind: input, shape index: {}]
  %s7 = inlined_call_operand.vmem [shape: f32[2,1,32], index: 7, kind: input, shape index: {}]
  %s8 = inlined_call_operand.vmem [shape: f32[2,1,32], index: 8, kind: input, shape index: {}]
  %s9 = inlined_call_operand.vmem [shape: f32[2,32,128], index: 9, kind: input, shape index: {}]
  %s10 = inlined_call_operand.vmem [shape: f32[2,1,128], index: 10, kind: input, shape index: {}]
  %s11 = inlined_call_operand.vmem [shape: f32[2,128,32], index: 11, kind: input, shape index: {}]
  %s12 = inlined_call_operand.vmem [shape: f32[2,1,32], index: 12, kind: input, shape index: {}]
  %s13 = inlined_call_operand.vmem [shape: f32[2,1,32], index: 13, kind: input, shape index: {}]
  %s14 = inlined_call_operand.vmem [shape: f32[2,1,32], index: 14, kind: input, shape index: {}]
  %s15 = inlined_call_operand.hbm [shape: f32[16,32], index: 15, kind: output, shape index: {}]
  %s16 = sld [smem:[#allocation0]]
  $region101: #{tpu_custom_call.1} parent=0
    _
  %s18 = ssub.s32 1, %s16
  %s19 = scalar_select 0, %s18, %s16
  $region1: #{tpu_custom_call.1} parent=0
    #allocation2 [shape = 'u8[8192]{0}', space=vmem, size = 0x2000, scoped, tag = 'input window, operand 0, single buffered']
    #allocation3 [shape = 's32[2]{0}', space=sflag, size = 0x8, scoped, tag = 'scoped memory for tpu_custom_call.1']
    #allocation4 [shape = 's32[2]{0}', space=sflag, size = 0x8, scoped, tag = 'scoped memory for tpu_custom_call.1']
    #allocation5 [shape = 'u8[8192]{0}', space=vmem, size = 0x2000, scoped, tag = 'output window, operand 0, single buffered']
    %20 = vsyncpa [#allocation3], 0
    %21 = vsyncpa [#allocation4], 0
    loop: start=0, step=1, limit=4
    $region2: #{tpu_custom_call.1} parent=1 // loop_pre_header
      _
    $region3: #{tpu_custom_call.1} parent=1 // loop_header
      %s23 = sphi 0, %s27
      %p24 = scmp.ge.s32.totalorder %s23, 4
      %s31 = sphi 0, %s31
      %s33 = sphi 0, %s31
      %s34 = sphi 0, %s33
      %s48 = sphi 0, %s34
      %s54 = sphi 0, %s56
      %s57 = sphi 0, %s54
      %s58 = sphi 0, %s57
      %s74 = sphi 0, %s58
      %s80 = sphi 0, %s82
      %s83 = sphi 0, %s80
      %s84 = sphi 0, %s83
      %s100 = sphi 0, %s84
      %s106 = sphi 0, %s108
      %s109 = sphi 0, %s106
      %s110 = sphi 0, %s109
      %s126 = sphi 0, %s110
      %s132 = sphi 0, %s134
      %s135 = sphi 0, %s132
      %s136 = sphi 0, %s135
      %s152 = sphi 0, %s136
      %s158 = sphi 0, %s160
      %s161 = sphi 0, %s158
      %s162 = sphi 0, %s161
      %s178 = sphi 0, %s162
      %s184 = sphi 0, %s186
      %s187 = sphi 0, %s184
      %s188 = sphi 0, %s187
      %s204 = sphi 0, %s188
      %s210 = sphi 0, %s212
      %s213 = sphi 0, %s210
      %s214 = sphi 0, %s213
      %s230 = sphi 0, %s214
      %s236 = sphi 0, %s238
      %s239 = sphi 0, %s236
      %s240 = sphi 0, %s239
      %s256 = sphi 0, %s240
      %s262 = sphi 0, %s264
      %s265 = sphi 0, %s262
      %s266 = sphi 0, %s265
      %s282 = sphi 0, %s266
      %s288 = sphi 0, %s290
      %s291 = sphi 0, %s288
      %s292 = sphi 0, %s291
      %s308 = sphi 0, %s292
      %s314 = sphi 0, %s316
      %s317 = sphi 0, %s314
      %s318 = sphi 0, %s317
      %s334 = sphi 0, %s318
      %s340 = sphi 0, %s342
      %s343 = sphi 0, %s340
      %s344 = sphi 0, %s343
      %s360 = sphi 0, %s344
      %s366 = sphi 0, %s368
      %s369 = sphi 0, %s366
      %s370 = sphi 0, %s369
      %s386 = sphi 0, %s370
      %s392 = sphi 0, %s394
      %s395 = sphi 0, %s392
      %s396 = sphi 0, %s395
      %s412 = sphi 0, %s396
      %s416 = sphi 0, %s416
      %s418 = sphi 0, %s416
      %s419 = sphi 0, %s418
      %s433 = sphi 0, %s419
    $region4: #{tpu_custom_call.1} parent=1 // loop_header_branch
      %26 = sbr.rel (%p24) target = $region8
    $region5: #{tpu_custom_call.1} parent=1 // loop_body
      %s28 = ssub.s32 %s23, 1
      %s29 = ssub.s32 %s23, 2
      %s30 = sadd.s32 %s23, 1
      %s32 = sadd.s32 %s31, 1
      %p35 = scmp.eq.s32.totalorder %s23, 1
      %p36 = scmp.ne.s32.totalorder %s31, %s33
      %p37 = scmp.eq.s32.totalorder %s23, 0
      %p38 = por %p36, %p37
      %p39 = scmp.ne.s32.totalorder %s31, %s33
      %p40 = scmp.eq.s32.totalorder %s28, 1
      %p41 = por %p39, %p40
      %p42 = scmp.ne.s32.totalorder %s33, %s34
      %p43 = scmp.eq.s32.totalorder %s28, 0
      %p44 = por %p42, %p43
      %p45 = scmp.ne.s32.totalorder %s33, %s34
      %p46 = scmp.eq.s32.totalorder %s29, 1
      %p47 = por %p45, %p46
      %p49 = scmp.ne.s32.totalorder %s34, %s48
      %p50 = scmp.eq.s32.totalorder %s29, 0
      %p51 = por %p49, %p50
      %s52 = ssub.s32 %s23, %s30
      %p53 = scmp.eq.s32.totalorder %s52, 0
      %s55 = sadd.s32 %s54, 1
      %s56 = scalar_select %p53, %s54, %s55
      %p59 = pneg %p53
      %p60 = scmp.eq.s32.totalorder %s23, 1
      %p61 = por %p59, %p60
      %p62 = scmp.ne.s32.totalorder %s54, %s57
      %p63 = scmp.eq.s32.totalorder %s23, 0
      %p64 = por %p62, %p63
      %p65 = scmp.ne.s32.totalorder %s54, %s57
      %p66 = scmp.eq.s32.totalorder %s28, 1
      %p67 = por %p65, %p66
      %p68 = scmp.ne.s32.totalorder %s57, %s58
      %p69 = scmp.eq.s32.totalorder %s28, 0
      %p70 = por %p68, %p69
      %p71 = scmp.ne.s32.totalorder %s57, %s58
      %p72 = scmp.eq.s32.totalorder %s29, 1
      %p73 = por %p71, %p72
      %p75 = scmp.ne.s32.totalorder %s58, %s74
      %p76 = scmp.eq.s32.totalorder %s29, 0
      %p77 = por %p75, %p76
      %s78 = ssub.s32 %s23, %s30
      %p79 = scmp.eq.s32.totalorder %s78, 0
      %s81 = sadd.s32 %s80, 1
      %s82 = scalar_select %p79, %s80, %s81
      %p85 = pneg %p79
      %p86 = scmp.eq.s32.totalorder %s23, 1
      %p87 = por %p85, %p86
      %p88 = scmp.ne.s32.totalorder %s80, %s83
      %p89 = scmp.eq.s32.totalorder %s23, 0
      %p90 = por %p88, %p89
      %p91 = scmp.ne.s32.totalorder %s80, %s83
      %p92 = scmp.eq.s32.totalorder %s28, 1
      %p93 = por %p91, %p92
      %p94 = scmp.ne.s32.totalorder %s83, %s84
      %p95 = scmp.eq.s32.totalorder %s28, 0
      %p96 = por %p94, %p95
      %p97 = scmp.ne.s32.totalorder %s83, %s84
      %p98 = scmp.eq.s32.totalorder %s29, 1
      %p99 = por %p97, %p98
      %p101 = scmp.ne.s32.totalorder %s84, %s100
      %p102 = scmp.eq.s32.totalorder %s29, 0
      %p103 = por %p101, %p102
      %s104 = ssub.s32 %s23, %s30
      %p105 = scmp.eq.s32.totalorder %s104, 0
      %s107 = sadd.s32 %s106, 1
      %s108 = scalar_select %p105, %s106, %s107
      %p111 = pneg %p105
      %p112 = scmp.eq.s32.totalorder %s23, 1
      %p113 = por %p111, %p112
      %p114 = scmp.ne.s32.totalorder %s106, %s109
      %p115 = scmp.eq.s32.totalorder %s23, 0
      %p116 = por %p114, %p115
      %p117 = scmp.ne.s32.totalorder %s106, %s109
      %p118 = scmp.eq.s32.totalorder %s28, 1
      %p119 = por %p117, %p118
      %p120 = scmp.ne.s32.totalorder %s109, %s110
      %p121 = scmp.eq.s32.totalorder %s28, 0
      %p122 = por %p120, %p121
      %p123 = scmp.ne.s32.totalorder %s109, %s110
      %p124 = scmp.eq.s32.totalorder %s29, 1
      %p125 = por %p123, %p124
      %p127 = scmp.ne.s32.totalorder %s110, %s126
      %p128 = scmp.eq.s32.totalorder %s29, 0
      %p129 = por %p127, %p128
      %s130 = ssub.s32 %s23, %s30
      %p131 = scmp.eq.s32.totalorder %s130, 0
      %s133 = sadd.s32 %s132, 1
      %s134 = scalar_select %p131, %s132, %s133
      %p137 = pneg %p131
      %p138 = scmp.eq.s32.totalorder %s23, 1
      %p139 = por %p137, %p138
      %p140 = scmp.ne.s32.totalorder %s132, %s135
      %p141 = scmp.eq.s32.totalorder %s23, 0
      %p142 = por %p140, %p141
      %p143 = scmp.ne.s32.totalorder %s132, %s135
      %p144 = scmp.eq.s32.totalorder %s28, 1
      %p145 = por %p143, %p144
      %p146 = scmp.ne.s32.totalorder %s135, %s136
      %p147 = scmp.eq.s32.totalorder %s28, 0
      %p148 = por %p146, %p147
      %p149 = scmp.ne.s32.totalorder %s135, %s136
      %p150 = scmp.eq.s32.totalorder %s29, 1
      %p151 = por %p149, %p150
      %p153 = scmp.ne.s32.totalorder %s136, %s152
      %p154 = scmp.eq.s32.totalorder %s29, 0
      %p155 = por %p153, %p154
      %s156 = ssub.s32 %s23, %s30
      %p157 = scmp.eq.s32.totalorder %s156, 0
      %s159 = sadd.s32 %s158, 1
      %s160 = scalar_select %p157, %s158, %s159
      %p163 = pneg %p157
      %p164 = scmp.eq.s32.totalorder %s23, 1
      %p165 = por %p163, %p164
      %p166 = scmp.ne.s32.totalorder %s158, %s161
      %p167 = scmp.eq.s32.totalorder %s23, 0
      %p168 = por %p166, %p167
      %p169 = scmp.ne.s32.totalorder %s158, %s161
      %p170 = scmp.eq.s32.totalorder %s28, 1
      %p171 = por %p169, %p170
      %p172 = scmp.ne.s32.totalorder %s161, %s162
      %p173 = scmp.eq.s32.totalorder %s28, 0
      %p174 = por %p172, %p173
      %p175 = scmp.ne.s32.totalorder %s161, %s162
      %p176 = scmp.eq.s32.totalorder %s29, 1
      %p177 = por %p175, %p176
      %p179 = scmp.ne.s32.totalorder %s162, %s178
      %p180 = scmp.eq.s32.totalorder %s29, 0
      %p181 = por %p179, %p180
      %s182 = ssub.s32 %s23, %s30
      %p183 = scmp.eq.s32.totalorder %s182, 0
      %s185 = sadd.s32 %s184, 1
      %s186 = scalar_select %p183, %s184, %s185
      %p189 = pneg %p183
      %p190 = scmp.eq.s32.totalorder %s23, 1
      %p191 = por %p189, %p190
      %p192 = scmp.ne.s32.totalorder %s184, %s187
      %p193 = scmp.eq.s32.totalorder %s23, 0
      %p194 = por %p192, %p193
      %p195 = scmp.ne.s32.totalorder %s184, %s187
      %p196 = scmp.eq.s32.totalorder %s28, 1
      %p197 = por %p195, %p196
      %p198 = scmp.ne.s32.totalorder %s187, %s188
      %p199 = scmp.eq.s32.totalorder %s28, 0
      %p200 = por %p198, %p199
      %p201 = scmp.ne.s32.totalorder %s187, %s188
      %p202 = scmp.eq.s32.totalorder %s29, 1
      %p203 = por %p201, %p202
      %p205 = scmp.ne.s32.totalorder %s188, %s204
      %p206 = scmp.eq.s32.totalorder %s29, 0
      %p207 = por %p205, %p206
      %s208 = ssub.s32 %s23, %s30
      %p209 = scmp.eq.s32.totalorder %s208, 0
      %s211 = sadd.s32 %s210, 1
      %s212 = scalar_select %p209, %s210, %s211
      %p215 = pneg %p209
      %p216 = scmp.eq.s32.totalorder %s23, 1
      %p217 = por %p215, %p216
      %p218 = scmp.ne.s32.totalorder %s210, %s213
      %p219 = scmp.eq.s32.totalorder %s23, 0
      %p220 = por %p218, %p219
      %p221 = scmp.ne.s32.totalorder %s210, %s213
      %p222 = scmp.eq.s32.totalorder %s28, 1
      %p223 = por %p221, %p222
      %p224 = scmp.ne.s32.totalorder %s213, %s214
      %p225 = scmp.eq.s32.totalorder %s28, 0
      %p226 = por %p224, %p225
      %p227 = scmp.ne.s32.totalorder %s213, %s214
      %p228 = scmp.eq.s32.totalorder %s29, 1
      %p229 = por %p227, %p228
      %p231 = scmp.ne.s32.totalorder %s214, %s230
      %p232 = scmp.eq.s32.totalorder %s29, 0
      %p233 = por %p231, %p232
      %s234 = ssub.s32 %s23, %s30
      %p235 = scmp.eq.s32.totalorder %s234, 0
      %s237 = sadd.s32 %s236, 1
      %s238 = scalar_select %p235, %s236, %s237
      %p241 = pneg %p235
      %p242 = scmp.eq.s32.totalorder %s23, 1
      %p243 = por %p241, %p242
      %p244 = scmp.ne.s32.totalorder %s236, %s239
      %p245 = scmp.eq.s32.totalorder %s23, 0
      %p246 = por %p244, %p245
      %p247 = scmp.ne.s32.totalorder %s236, %s239
      %p248 = scmp.eq.s32.totalorder %s28, 1
      %p249 = por %p247, %p248
      %p250 = scmp.ne.s32.totalorder %s239, %s240
      %p251 = scmp.eq.s32.totalorder %s28, 0
      %p252 = por %p250, %p251
      %p253 = scmp.ne.s32.totalorder %s239, %s240
      %p254 = scmp.eq.s32.totalorder %s29, 1
      %p255 = por %p253, %p254
      %p257 = scmp.ne.s32.totalorder %s240, %s256
      %p258 = scmp.eq.s32.totalorder %s29, 0
      %p259 = por %p257, %p258
      %s260 = ssub.s32 %s23, %s30
      %p261 = scmp.eq.s32.totalorder %s260, 0
      %s263 = sadd.s32 %s262, 1
      %s264 = scalar_select %p261, %s262, %s263
      %p267 = pneg %p261
      %p268 = scmp.eq.s32.totalorder %s23, 1
      %p269 = por %p267, %p268
      %p270 = scmp.ne.s32.totalorder %s262, %s265
      %p271 = scmp.eq.s32.totalorder %s23, 0
      %p272 = por %p270, %p271
      %p273 = scmp.ne.s32.totalorder %s262, %s265
      %p274 = scmp.eq.s32.totalorder %s28, 1
      %p275 = por %p273, %p274
      %p276 = scmp.ne.s32.totalorder %s265, %s266
      %p277 = scmp.eq.s32.totalorder %s28, 0
      %p278 = por %p276, %p277
      %p279 = scmp.ne.s32.totalorder %s265, %s266
      %p280 = scmp.eq.s32.totalorder %s29, 1
      %p281 = por %p279, %p280
      %p283 = scmp.ne.s32.totalorder %s266, %s282
      %p284 = scmp.eq.s32.totalorder %s29, 0
      %p285 = por %p283, %p284
      %s286 = ssub.s32 %s23, %s30
      %p287 = scmp.eq.s32.totalorder %s286, 0
      %s289 = sadd.s32 %s288, 1
      %s290 = scalar_select %p287, %s288, %s289
      %p293 = pneg %p287
      %p294 = scmp.eq.s32.totalorder %s23, 1
      %p295 = por %p293, %p294
      %p296 = scmp.ne.s32.totalorder %s288, %s291
      %p297 = scmp.eq.s32.totalorder %s23, 0
      %p298 = por %p296, %p297
      %p299 = scmp.ne.s32.totalorder %s288, %s291
      %p300 = scmp.eq.s32.totalorder %s28, 1
      %p301 = por %p299, %p300
      %p302 = scmp.ne.s32.totalorder %s291, %s292
      %p303 = scmp.eq.s32.totalorder %s28, 0
      %p304 = por %p302, %p303
      %p305 = scmp.ne.s32.totalorder %s291, %s292
      %p306 = scmp.eq.s32.totalorder %s29, 1
      %p307 = por %p305, %p306
      %p309 = scmp.ne.s32.totalorder %s292, %s308
      %p310 = scmp.eq.s32.totalorder %s29, 0
      %p311 = por %p309, %p310
      %s312 = ssub.s32 %s23, %s30
      %p313 = scmp.eq.s32.totalorder %s312, 0
      %s315 = sadd.s32 %s314, 1
      %s316 = scalar_select %p313, %s314, %s315
      %p319 = pneg %p313
      %p320 = scmp.eq.s32.totalorder %s23, 1
      %p321 = por %p319, %p320
      %p322 = scmp.ne.s32.totalorder %s314, %s317
      %p323 = scmp.eq.s32.totalorder %s23, 0
      %p324 = por %p322, %p323
      %p325 = scmp.ne.s32.totalorder %s314, %s317
      %p326 = scmp.eq.s32.totalorder %s28, 1
      %p327 = por %p325, %p326
      %p328 = scmp.ne.s32.totalorder %s317, %s318
      %p329 = scmp.eq.s32.totalorder %s28, 0
      %p330 = por %p328, %p329
      %p331 = scmp.ne.s32.totalorder %s317, %s318
      %p332 = scmp.eq.s32.totalorder %s29, 1
      %p333 = por %p331, %p332
      %p335 = scmp.ne.s32.totalorder %s318, %s334
      %p336 = scmp.eq.s32.totalorder %s29, 0
      %p337 = por %p335, %p336
      %s338 = ssub.s32 %s23, %s30
      %p339 = scmp.eq.s32.totalorder %s338, 0
      %s341 = sadd.s32 %s340, 1
      %s342 = scalar_select %p339, %s340, %s341
      %p345 = pneg %p339
      %p346 = scmp.eq.s32.totalorder %s23, 1
      %p347 = por %p345, %p346
      %p348 = scmp.ne.s32.totalorder %s340, %s343
      %p349 = scmp.eq.s32.totalorder %s23, 0
      %p350 = por %p348, %p349
      %p351 = scmp.ne.s32.totalorder %s340, %s343
      %p352 = scmp.eq.s32.totalorder %s28, 1
      %p353 = por %p351, %p352
      %p354 = scmp.ne.s32.totalorder %s343, %s344
      %p355 = scmp.eq.s32.totalorder %s28, 0
      %p356 = por %p354, %p355
      %p357 = scmp.ne.s32.totalorder %s343, %s344
      %p358 = scmp.eq.s32.totalorder %s29, 1
      %p359 = por %p357, %p358
      %p361 = scmp.ne.s32.totalorder %s344, %s360
      %p362 = scmp.eq.s32.totalorder %s29, 0
      %p363 = por %p361, %p362
      %s364 = ssub.s32 %s23, %s30
      %p365 = scmp.eq.s32.totalorder %s364, 0
      %s367 = sadd.s32 %s366, 1
      %s368 = scalar_select %p365, %s366, %s367
      %p371 = pneg %p365
      %p372 = scmp.eq.s32.totalorder %s23, 1
      %p373 = por %p371, %p372
      %p374 = scmp.ne.s32.totalorder %s366, %s369
      %p375 = scmp.eq.s32.totalorder %s23, 0
      %p376 = por %p374, %p375
      %p377 = scmp.ne.s32.totalorder %s366, %s369
      %p378 = scmp.eq.s32.totalorder %s28, 1
      %p379 = por %p377, %p378
      %p380 = scmp.ne.s32.totalorder %s369, %s370
      %p381 = scmp.eq.s32.totalorder %s28, 0
      %p382 = por %p380, %p381
      %p383 = scmp.ne.s32.totalorder %s369, %s370
      %p384 = scmp.eq.s32.totalorder %s29, 1
      %p385 = por %p383, %p384
      %p387 = scmp.ne.s32.totalorder %s370, %s386
      %p388 = scmp.eq.s32.totalorder %s29, 0
      %p389 = por %p387, %p388
      %s390 = ssub.s32 %s23, %s30
      %p391 = scmp.eq.s32.totalorder %s390, 0
      %s393 = sadd.s32 %s392, 1
      %s394 = scalar_select %p391, %s392, %s393
      %p397 = pneg %p391
      %p398 = scmp.eq.s32.totalorder %s23, 1
      %p399 = por %p397, %p398
      %p400 = scmp.ne.s32.totalorder %s392, %s395
      %p401 = scmp.eq.s32.totalorder %s23, 0
      %p402 = por %p400, %p401
      %p403 = scmp.ne.s32.totalorder %s392, %s395
      %p404 = scmp.eq.s32.totalorder %s28, 1
      %p405 = por %p403, %p404
      %p406 = scmp.ne.s32.totalorder %s395, %s396
      %p407 = scmp.eq.s32.totalorder %s28, 0
      %p408 = por %p406, %p407
      %p409 = scmp.ne.s32.totalorder %s395, %s396
      %p410 = scmp.eq.s32.totalorder %s29, 1
      %p411 = por %p409, %p410
      %p413 = scmp.ne.s32.totalorder %s396, %s412
      %p414 = scmp.eq.s32.totalorder %s29, 0
      %p415 = por %p413, %p414
      %s417 = sadd.s32 %s416, 1
      %p420 = scmp.eq.s32.totalorder %s23, 1
      %p421 = scmp.ne.s32.totalorder %s416, %s418
      %p422 = scmp.eq.s32.totalorder %s23, 0
      %p423 = por %p421, %p422
      %p424 = scmp.ne.s32.totalorder %s416, %s418
      %p425 = scmp.eq.s32.totalorder %s28, 1
      %p426 = por %p424, %p425
      %p427 = scmp.ne.s32.totalorder %s418, %s419
      %p428 = scmp.eq.s32.totalorder %s28, 0
      %p429 = por %p427, %p428
      %p430 = scmp.ne.s32.totalorder %s418, %s419
      %p431 = scmp.eq.s32.totalorder %s29, 1
      %p432 = por %p430, %p431
      %p434 = scmp.ne.s32.totalorder %s419, %s433
      %p435 = scmp.eq.s32.totalorder %s29, 0
      %p436 = por %p434, %p435
      %p437 = scmp.le.s32.totalorder 1, %s23
      %p438 = scmp.lt.s32.totalorder %s23, 3
      %p439 = pnand %p437, %p438
      %p440 = pneg %p439
      // Predicated region
      $region9: #{tpu_custom_call.1} parent=5 // pred_check
        _
      $region10: #{tpu_custom_call.1} parent=5 // pred_check_branch
        %442 = sbr.rel (%p439) target = $region12
      $region11: #{tpu_custom_call.1} parent=5 // pred_region
        %s443 = ssub.s32 %s23, 1
        // Predicated region
        $region13: #{tpu_custom_call.1} parent=11 // pred_check
          %p444 = pneg %p44
        $region14: #{tpu_custom_call.1} parent=11 // pred_check_branch
          %446 = sbr.rel (%p444) target = $region16
        $region15: #{tpu_custom_call.1} parent=11 // pred_region
          %s448 = ssub.s32 256, 256
          %449 = vsyncadd [#allocation3], %s448
          %s450 = sshll.u32 [#allocation2], 4
          %s451 = int_to_ptr.vmem [resolvable:$true] %s450
          %456 = dma.hbm_to_vmem [thread:$0]  %s0, 256, %s451, [#allocation3], 128, 128, 8
        $region16: #{tpu_custom_call.1} parent=11 // pred_fallthru
          _
      $region12: #{tpu_custom_call.1} parent=5 // pred_fallthru
        _
      %p457 = scmp.lt.s32.totalorder %s23, 2
      // Predicated region
      $region17: #{tpu_custom_call.1} parent=5 // pred_check
        %p458 = pneg %p457
      $region18: #{tpu_custom_call.1} parent=5 // pred_check_branch
        %460 = sbr.rel (%p458) target = $region20
      $region19: #{tpu_custom_call.1} parent=5 // pred_region
        // Predicated region
        $region21: #{tpu_custom_call.1} parent=19 // pred_check
          %p461 = pneg %p64
        $region22: #{tpu_custom_call.1} parent=19 // pred_check_branch
          %463 = sbr.rel (%p461) target = $region24
        $region23: #{tpu_custom_call.1} parent=19 // pred_region
          %p464 = scmp.lt.s32.totalorder %s23, 1
          %s465 = scalar_select %p464, %s23, 1
          %s466 = smul.addr %s465, 4
          %s467 = smul.addr %s466, 8
          %s468 = scalar_lea.vmem %s1, %s467
        $region24: #{tpu_custom_call.1} parent=19 // pred_fallthru
          _
        // Predicated region
        $region25: #{tpu_custom_call.1} parent=19 // pred_check
          %p469 = pneg %p90
        $region26: #{tpu_custom_call.1} parent=19 // pred_check_branch
          %471 = sbr.rel (%p469) target = $region28
        $region27: #{tpu_custom_call.1} parent=19 // pred_region
          %p472 = scmp.lt.s32.totalorder %s23, 1
          %s473 = scalar_select %p472, %s23, 1
          %s474 = scalar_lea.vmem %s2, %s473
        $region28: #{tpu_custom_call.1} parent=19 // pred_fallthru
          _
        // Predicated region
        $region29: #{tpu_custom_call.1} parent=19 // pred_check
          %p475 = pneg %p116
        $region30: #{tpu_custom_call.1} parent=19 // pred_check_branch
          %477 = sbr.rel (%p475) target = $region32
        $region31: #{tpu_custom_call.1} parent=19 // pred_region
          %p478 = scmp.lt.s32.totalorder %s23, 1
          %s479 = scalar_select %p478, %s23, 1
          %s480 = scalar_lea.vmem %s3, %s479
        $region32: #{tpu_custom_call.1} parent=19 // pred_fallthru
          _
        // Predicated region
        $region33: #{tpu_custom_call.1} parent=19 // pred_check
          %p481 = pneg %p142
        $region34: #{tpu_custom_call.1} parent=19 // pred_check_branch
          %483 = sbr.rel (%p481) target = $region36
        $region35: #{tpu_custom_call.1} parent=19 // pred_region
          %p484 = scmp.lt.s32.totalorder %s23, 1
          %s485 = scalar_select %p484, %s23, 1
          %s486 = smul.addr %s485, 8
          %s487 = smul.addr %s486, 8
          %s488 = scalar_lea.vmem %s4, %s487
        $region36: #{tpu_custom_call.1} parent=19 // pred_fallthru
          _
        // Predicated region
        $region37: #{tpu_custom_call.1} parent=19 // pred_check
          %p489 = pneg %p168
        $region38: #{tpu_custom_call.1} parent=19 // pred_check_branch
          %491 = sbr.rel (%p489) target = $region40
        $region39: #{tpu_custom_call.1} parent=19 // pred_region
          %p492 = scmp.lt.s32.totalorder %s23, 1
          %s493 = scalar_select %p492, %s23, 1
          %s494 = smul.addr %s493, 4
          %s495 = smul.addr %s494, 8
          %s496 = scalar_lea.vmem %s5, %s495
        $region40: #{tpu_custom_call.1} parent=19 // pred_fallthru
          _
        // Predicated region
        $region41: #{tpu_custom_call.1} parent=19 // pred_check
          %p497 = pneg %p194
        $region42: #{tpu_custom_call.1} parent=19 // pred_check_branch
          %499 = sbr.rel (%p497) target = $region44
        $region43: #{tpu_custom_call.1} parent=19 // pred_region
          %p500 = scmp.lt.s32.totalorder %s23, 1
          %s501 = scalar_select %p500, %s23, 1
          %s502 = scalar_lea.vmem %s6, %s501
        $region44: #{tpu_custom_call.1} parent=19 // pred_fallthru
          _
        // Predicated region
        $region45: #{tpu_custom_call.1} parent=19 // pred_check
          %p503 = pneg %p220
        $region46: #{tpu_custom_call.1} parent=19 // pred_check_branch
          %505 = sbr.rel (%p503) target = $region48
        $region47: #{tpu_custom_call.1} parent=19 // pred_region
          %p506 = scmp.lt.s32.totalorder %s23, 1
          %s507 = scalar_select %p506, %s23, 1
          %s508 = scalar_lea.vmem %s7, %s507
        $region48: #{tpu_custom_call.1} parent=19 // pred_fallthru
          _
        // Predicated region
        $region49: #{tpu_custom_call.1} parent=19 // pred_check
          %p509 = pneg %p246
        $region50: #{tpu_custom_call.1} parent=19 // pred_check_branch
          %511 = sbr.rel (%p509) target = $region52
        $region51: #{tpu_custom_call.1} parent=19 // pred_region
          %p512 = scmp.lt.s32.totalorder %s23, 1
          %s513 = scalar_select %p512, %s23, 1
          %s514 = scalar_lea.vmem %s8, %s513
        $region52: #{tpu_custom_call.1} parent=19 // pred_fallthru
          _
        // Predicated region
        $region53: #{tpu_custom_call.1} parent=19 // pred_check
          %p515 = pneg %p272
        $region54: #{tpu_custom_call.1} parent=19 // pred_check_branch
          %517 = sbr.rel (%p515) target = $region56
        $region55: #{tpu_custom_call.1} parent=19 // pred_region
          %p518 = scmp.lt.s32.totalorder %s23, 1
          %s519 = scalar_select %p518, %s23, 1
          %s520 = smul.addr %s519, 4
          %s521 = smul.addr %s520, 8
          %s522 = scalar_lea.vmem %s9, %s521
        $region56: #{tpu_custom_call.1} parent=19 // pred_fallthru
          _
        // Predicated region
        $region57: #{tpu_custom_call.1} parent=19 // pred_check
          %p523 = pneg %p298
        $region58: #{tpu_custom_call.1} parent=19 // pred_check_branch
          %525 = sbr.rel (%p523) target = $region60
        $region59: #{tpu_custom_call.1} parent=19 // pred_region
          %p526 = scmp.lt.s32.totalorder %s23, 1
          %s527 = scalar_select %p526, %s23, 1
          %s528 = scalar_lea.vmem %s10, %s527
        $region60: #{tpu_custom_call.1} parent=19 // pred_fallthru
          _
        // Predicated region
        $region61: #{tpu_custom_call.1} parent=19 // pred_check
          %p529 = pneg %p324
        $region62: #{tpu_custom_call.1} parent=19 // pred_check_branch
          %531 = sbr.rel (%p529) target = $region64
        $region63: #{tpu_custom_call.1} parent=19 // pred_region
          %p532 = scmp.lt.s32.totalorder %s23, 1
          %s533 = scalar_select %p532, %s23, 1
          %s534 = smul.addr %s533, 16
          %s535 = smul.addr %s534, 8
          %s536 = scalar_lea.vmem %s11, %s535
        $region64: #{tpu_custom_call.1} parent=19 // pred_fallthru
          _
        // Predicated region
        $region65: #{tpu_custom_call.1} parent=19 // pred_check
          %p537 = pneg %p350
        $region66: #{tpu_custom_call.1} parent=19 // pred_check_branch
          %539 = sbr.rel (%p537) target = $region68
        $region67: #{tpu_custom_call.1} parent=19 // pred_region
          %p540 = scmp.lt.s32.totalorder %s23, 1
          %s541 = scalar_select %p540, %s23, 1
          %s542 = scalar_lea.vmem %s12, %s541
        $region68: #{tpu_custom_call.1} parent=19 // pred_fallthru
          _
        // Predicated region
        $region69: #{tpu_custom_call.1} parent=19 // pred_check
          %p543 = pneg %p376
        $region70: #{tpu_custom_call.1} parent=19 // pred_check_branch
          %545 = sbr.rel (%p543) target = $region72
        $region71: #{tpu_custom_call.1} parent=19 // pred_region
          %p546 = scmp.lt.s32.totalorder %s23, 1
          %s547 = scalar_select %p546, %s23, 1
          %s548 = scalar_lea.vmem %s13, %s547
        $region72: #{tpu_custom_call.1} parent=19 // pred_fallthru
          _
        // Predicated region
        $region73: #{tpu_custom_call.1} parent=19 // pred_check
          %p549 = pneg %p402
        $region74: #{tpu_custom_call.1} parent=19 // pred_check_branch
          %551 = sbr.rel (%p549) target = $region76
        $region75: #{tpu_custom_call.1} parent=19 // pred_region
          %p552 = scmp.lt.s32.totalorder %s23, 1
          %s553 = scalar_select %p552, %s23, 1
          %s554 = scalar_lea.vmem %s14, %s553
        $region76: #{tpu_custom_call.1} parent=19 // pred_fallthru
          _
      $region20: #{tpu_custom_call.1} parent=5 // pred_fallthru
        _
      %p555 = scmp.le.s32.totalorder 1, %s23
      %p556 = scmp.lt.s32.totalorder %s23, 3
      %p557 = pnand %p555, %p556
      %p558 = pneg %p557
      // Predicated region
      $region77: #{tpu_custom_call.1} parent=5 // pred_check
        _
      $region78: #{tpu_custom_call.1} parent=5 // pred_check_branch
        %560 = sbr.rel (%p557) target = $region80
      $region79: #{tpu_custom_call.1} parent=5 // pred_region
        %s561 = ssub.s32 %s23, 1
        // Predicated region
        $region81: #{tpu_custom_call.1} parent=79 // pred_check
          %p562 = pneg %p44
        $region82: #{tpu_custom_call.1} parent=79 // pred_check_branch
          %564 = sbr.rel (%p562) target = $region84
        $region83: #{tpu_custom_call.1} parent=79 // pred_region
          %565 = dma.done [#allocation3], 256
        $region84: #{tpu_custom_call.1} parent=79 // pred_fallthru
          _
        %p566 = pneg %p44
        %p567 = pneg %p41
        %p568 = scmp.lt.s32.totalorder %s28, 1
        %s569 = scalar_select %p568, %s28, 1
        %s570 = smul.addr %s569, 4
        %s571 = smul.addr %s570, 8
        %s572 = scalar_lea.vmem %s1, %s571
        %p573 = pneg %p70
        %p574 = pneg %p67
        %p575 = scmp.lt.s32.totalorder %s28, 1
        %s576 = scalar_select %p575, %s28, 1
        %s577 = scalar_lea.vmem %s2, %s576
        %p578 = pneg %p96
        %p579 = pneg %p93
        %p580 = scmp.lt.s32.totalorder %s28, 1
        %s581 = scalar_select %p580, %s28, 1
        %s582 = scalar_lea.vmem %s3, %s581
        %p583 = pneg %p122
        %p584 = pneg %p119
        %p585 = scmp.lt.s32.totalorder %s28, 1
        %s586 = scalar_select %p585, %s28, 1
        %s587 = smul.addr %s586, 8
        %s588 = smul.addr %s587, 8
        %s589 = scalar_lea.vmem %s4, %s588
        %p590 = pneg %p148
        %p591 = pneg %p145
        %p592 = scmp.lt.s32.totalorder %s28, 1
        %s593 = scalar_select %p592, %s28, 1
        %s594 = smul.addr %s593, 4
        %s595 = smul.addr %s594, 8
        %s596 = scalar_lea.vmem %s5, %s595
        %p597 = pneg %p174
        %p598 = pneg %p171
        %p599 = scmp.lt.s32.totalorder %s28, 1
        %s600 = scalar_select %p599, %s28, 1
        %s601 = scalar_lea.vmem %s6, %s600
        %p602 = pneg %p200
        %p603 = pneg %p197
        %p604 = scmp.lt.s32.totalorder %s28, 1
        %s605 = scalar_select %p604, %s28, 1
        %s606 = scalar_lea.vmem %s7, %s605
        %p607 = pneg %p226
        %p608 = pneg %p223
        %p609 = scmp.lt.s32.totalorder %s28, 1
        %s610 = scalar_select %p609, %s28, 1
        %s611 = scalar_lea.vmem %s8, %s610
        %p612 = pneg %p252
        %p613 = pneg %p249
        %p614 = scmp.lt.s32.totalorder %s28, 1
        %s615 = scalar_select %p614, %s28, 1
        %s616 = smul.addr %s615, 4
        %s617 = smul.addr %s616, 8
        %s618 = scalar_lea.vmem %s9, %s617
        %p619 = pneg %p278
        %p620 = pneg %p275
        %p621 = scmp.lt.s32.totalorder %s28, 1
        %s622 = scalar_select %p621, %s28, 1
        %s623 = scalar_lea.vmem %s10, %s622
        %p624 = pneg %p304
        %p625 = pneg %p301
        %p626 = scmp.lt.s32.totalorder %s28, 1
        %s627 = scalar_select %p626, %s28, 1
        %s628 = smul.addr %s627, 16
        %s629 = smul.addr %s628, 8
        %s630 = scalar_lea.vmem %s11, %s629
        %p631 = pneg %p330
        %p632 = pneg %p327
        %p633 = scmp.lt.s32.totalorder %s28, 1
        %s634 = scalar_select %p633, %s28, 1
        %s635 = scalar_lea.vmem %s12, %s634
        %p636 = pneg %p356
        %p637 = pneg %p353
        %p638 = scmp.lt.s32.totalorder %s28, 1
        %s639 = scalar_select %p638, %s28, 1
        %s640 = scalar_lea.vmem %s13, %s639
        %p641 = pneg %p382
        %p642 = pneg %p379
        %p643 = scmp.lt.s32.totalorder %s28, 1
        %s644 = scalar_select %p643, %s28, 1
        %s645 = scalar_lea.vmem %s14, %s644
        %p646 = pneg %p408
        %p647 = pneg %p405
        %p648 = pneg %p429
        %p649 = pneg %p426
        %p650 = scmp.lt.s32.totalorder %s28, 1
        %s651 = scalar_select %p650, %s28, 1
        %s652 = smul.addr %s651, 4
        %s653 = smul.addr %s652, 8
        %s654 = scalar_lea.vmem %s1, %s653
        %p655 = scmp.lt.s32.totalorder %s28, 1
        %s656 = scalar_select %p655, %s28, 1
        %s657 = scalar_lea.vmem %s2, %s656
        %p658 = scmp.lt.s32.totalorder %s28, 1
        %s659 = scalar_select %p658, %s28, 1
        %s660 = scalar_lea.vmem %s3, %s659
        %p661 = scmp.lt.s32.totalorder %s28, 1
        %s662 = scalar_select %p661, %s28, 1
        %s663 = smul.addr %s662, 8
        %s664 = smul.addr %s663, 8
        %s665 = scalar_lea.vmem %s4, %s664
        %p666 = scmp.lt.s32.totalorder %s28, 1
        %s667 = scalar_select %p666, %s28, 1
        %s668 = smul.addr %s667, 4
        %s669 = smul.addr %s668, 8
        %s670 = scalar_lea.vmem %s5, %s669
        %p671 = scmp.lt.s32.totalorder %s28, 1
        %s672 = scalar_select %p671, %s28, 1
        %s673 = scalar_lea.vmem %s6, %s672
        %p674 = scmp.lt.s32.totalorder %s28, 1
        %s675 = scalar_select %p674, %s28, 1
        %s676 = scalar_lea.vmem %s7, %s675
        %p677 = scmp.lt.s32.totalorder %s28, 1
        %s678 = scalar_select %p677, %s28, 1
        %s679 = scalar_lea.vmem %s8, %s678
        %p680 = scmp.lt.s32.totalorder %s28, 1
        %s681 = scalar_select %p680, %s28, 1
        %s682 = smul.addr %s681, 4
        %s683 = smul.addr %s682, 8
        %s684 = scalar_lea.vmem %s9, %s683
        %p685 = scmp.lt.s32.totalorder %s28, 1
        %s686 = scalar_select %p685, %s28, 1
        %s687 = scalar_lea.vmem %s10, %s686
        %p688 = scmp.lt.s32.totalorder %s28, 1
        %s689 = scalar_select %p688, %s28, 1
        %s690 = smul.addr %s689, 16
        %s691 = smul.addr %s690, 8
        %s692 = scalar_lea.vmem %s11, %s691
        %p693 = scmp.lt.s32.totalorder %s28, 1
        %s694 = scalar_select %p693, %s28, 1
        %s695 = scalar_lea.vmem %s12, %s694
        %p696 = scmp.lt.s32.totalorder %s28, 1
        %s697 = scalar_select %p696, %s28, 1
        %s698 = scalar_lea.vmem %s13, %s697
        %p699 = scmp.lt.s32.totalorder %s28, 1
        %s700 = scalar_select %p699, %s28, 1
        %s701 = scalar_lea.vmem %s14, %s700
        %p702 = scmp.eq.s32.totalorder %s28, 0
        // Predicated region
        $region85: #{tpu_custom_call.1} parent=79 // pred_check
          %p703 = pneg %p702
        $region86: #{tpu_custom_call.1} parent=79 // pred_check_branch
          %705 = sbr.rel (%p703) target = $region88
        $region87: #{tpu_custom_call.1} parent=79 // pred_region
          %v706 = vld [vmem:[#allocation2] sm:$0xff]
          %v707 = vld [vmem:[#allocation2 + $0x8] sm:$0xff]
          %vm708 = vcmask 261120
          %709 = vst.msk [vmem:[#allocation5] sm:$0xff] %vm708, %v706
          %710 = vst.msk [vmem:[#allocation5 + $0x8] sm:$0xff] %vm708, %v707
        $region88: #{tpu_custom_call.1} parent=79 // pred_fallthru
          _
        %v711 = vld [vmem:[#allocation5] sm:$0xff]
        %v712 = vld [vmem:[#allocation5 + $0x8] sm:$0xff]
        %v713 = vld [vmem:[%s654] sm:$0xff]
        %v714 = vld [vmem:[%s654 + $0x8] sm:$0xff]
        %v715 = vld [vmem:[%s654 + $0x10] sm:$0xff]
        %v716 = vld [vmem:[%s654 + $0x18] sm:$0xff]
        %v717 = vld [vmem:[%s657] sm:$0x1]
        %v719 = vlaneseq
        %v720 = vshrl.u32 %v719, 7
        %v721 = vsub.s32 0, %v720
        %v722 = vrot.slane %v717, %v721
        %vm724 = vcmask 261120
        %v726 = vsel %vm724, %v711, 0
        %v729 = vsel %vm724, %v712, 0
        %731 = vmatprep.subr.mxu0 0.0
        %732 = vmatpush1.msra.mxu0 %v713
        %733 = vmatprep.subr.mxu0 0.0
        %734 = vmatpush1.msra.mxu0 %v714
        %735 = vmatprep.subr.mxu0 0.0
        %736 = vmatpush1.msra.mxu0 %v715
        %737 = vmatprep.subr.mxu0 0.0
        %738 = vmatpush1.msra.mxu0 %v716
        %739 = vmatprep.subr.mxu0 0.0
        %740 = vmatpush1.msra.mxu0 0.0
        %741 = vmatprep.subr.mxu0 0.0
        %742 = vmatpush1.msra.mxu0 0.0
        %743 = vmatprep.subr.mxu0 0.0
        %744 = vmatpush1.msra.mxu0 0.0
        %745 = vmatprep.subr.mxu0 0.0
        %746 = vmatpush1.msra.mxu0 0.0
        %747 = vmatprep.subr.mxu0 0.0
        %748 = vmatpush1.msra.mxu0 0.0
        %749 = vmatprep.subr.mxu0 0.0
        %750 = vmatpush1.msra.mxu0 0.0
        %751 = vmatprep.subr.mxu0 0.0
        %752 = vmatpush1.msra.mxu0 0.0
        %753 = vmatprep.subr.mxu0 0.0
        %754 = vmatpush1.msra.mxu0 0.0
        %755 = vmatprep.subr.mxu0 0.0
        %756 = vmatpush1.msra.mxu0 0.0
        %757 = vmatprep.subr.mxu0 0.0
        %758 = vmatpush1.msra.mxu0 0.0
        %759 = vmatprep.subr.mxu0 0.0
        %760 = vmatpush1.msra.mxu0 0.0
        %761 = vmatprep.subr.mxu0 0.0
        %762 = vmatpush1.msra.mxu0 0.0
        %763 = vmatprep.subr.mxu0 0.0
        %764 = vmatpush1.msra.mxu0 0.0
        %765 = vmatprep.subr.mxu0 0.0
        %766 = vmatpush1.msra.mxu0 0.0
        %767 = vmatprep.subr.mxu0 0.0
        %768 = vmatpush1.msra.mxu0 0.0
        %769 = vmatprep.subr.mxu0 0.0
        %770 = vmatpush1.msra.mxu0 0.0
        %771 = vmatprep.subr.mxu0 0.0
        %772 = vmatpush1.msra.mxu0 0.0
        %773 = vmatprep.subr.mxu0 0.0
        %774 = vmatpush1.msra.mxu0 0.0
        %775 = vmatprep.subr.mxu0 0.0
        %776 = vmatpush1.msra.mxu0 0.0
        %777 = vmatprep.subr.mxu0 0.0
        %778 = vmatpush1.msra.mxu0 0.0
        %779 = vmatprep.subr.mxu0 0.0
        %780 = vmatpush1.msra.mxu0 0.0
        %781 = vmatprep.subr.mxu0 0.0
        %782 = vmatpush1.msra.mxu0 0.0
        %783 = vmatprep.subr.mxu0 0.0
        %784 = vmatpush1.msra.mxu0 0.0
        %785 = vmatprep.subr.mxu0 0.0
        %786 = vmatpush1.msra.mxu0 0.0
        %787 = vmatprep.subr.mxu0 0.0
        %788 = vmatpush1.msra.mxu0 0.0
        %789 = vmatprep.subr.mxu0 0.0
        %790 = vmatpush1.msra.mxu0 0.0
        %791 = vmatprep.subr.mxu0 0.0
        %792 = vmatpush1.msra.mxu0 0.0
        %793 = vmatprep.subr.mxu0 0.0
        %794 = vmatpush1.msra.mxu0 0.0
        %795 = vmatprep.mubr.f32.mxu0 0.0
        %796 = vmatmul.mubr.f32.gmra.mrb[0].mxu0 %v726
        %v797 = vpop.f32.mrb[0].mxu0
        %v798 = vadd.f32 %v722, %v797
        %v799 = vpop.f32.mrb[0].mxu0
        %800 = vmatprep.mubr.f32.mxu0 0.0
        %801 = vmatmul.mubr.f32.gmra.mrb[0].mxu0 %v729
        %v802 = vpop.f32.mrb[0].mxu0
        %v803 = vadd.f32 %v722, %v802
        %v804 = vpop.f32.mrb[0].mxu0
        %805 = vdwg.mxu0
        %v806 = vld [vmem:[%s660] sm:$0x1]
        %v807 = vmul.f32 %v798, %v798
        %v808 = vmul.f32 %v803, %v803
        %vm809 = vcmask 64512
        %v810 = vsel %vm809, %v807, 0.0
        %811 = vadd.xlane.f32.xlu0 %v810
        %v812 = vpop.xlane.xlu0 %811
        %v813 = vsel %vm809, %v808, 0.0
        %814 = vadd.xlane.f32.xlu0 %v813
        %v815 = vpop.xlane.xlu0 %814
        %v816 = vmax.f32 %v812, 1e-24
        %v817 = vmax.f32 %v815, 1e-24
        %v818 = vrsqrt.pop %v816
        %v819 = vrsqrt.pop %v817
        %v820 = vmul.f32 %v798, %v818
        %v821 = vmul.f32 %v803, %v819
        %824 = vrot.lane.b32.xlu0 %v807, 96
        %v825 = vpop.permute.xlu0 %824
        %826 = vrot.lane.b32.xlu0 %v808, 96
        %v827 = vpop.permute.xlu0 %826
        %v830 = vsel %vm809, %v825, 0.0
        %831 = vadd.xlane.f32.xlu0 %v830
        %v832 = vpop.xlane.xlu0 %831
        %v833 = vsel %vm809, %v827, 0.0
        %834 = vadd.xlane.f32.xlu0 %v833
        %v835 = vpop.xlane.xlu0 %834
        %v836 = vmax.f32 %v832, 1e-24
        %v837 = vmax.f32 %v835, 1e-24
        %v838 = vrsqrt.pop %v836
        %v839 = vrsqrt.pop %v837
        %v840 = vmul.f32 %v798, %v838
        %v841 = vmul.f32 %v803, %v839
        %844 = vrot.lane.b32.xlu0 %v840, 96
        %v845 = vpop.permute.xlu0 %844
        %846 = vrot.lane.b32.xlu0 %v841, 96
        %v847 = vpop.permute.xlu0 %846
        %v849 = vsel %vm809, %v820, 0
        %v852 = vsel %vm809, %v821, 0
        %v854 = vsel %vm809, %v845, 0
        %v856 = vsel %vm809, %v847, 0
        %858 = vmatprep.subr.mxu0 0.0
        %859 = vmatpush1.xpose.msra.mxu0 %v854
        %860 = vmatprep.subr.mxu0 0.0
        %861 = vmatpush1.xpose.msra.mxu0 %v856
        %862 = vmatprep.subr.mxu0 0.0
        %863 = vmatpush1.xpose.msra.mxu0 0.0
        %864 = vmatprep.subr.mxu0 0.0
        %865 = vmatpush1.xpose.msra.mxu0 0.0
        %866 = vmatprep.subr.mxu0 0.0
        %867 = vmatpush1.xpose.msra.mxu0 0.0
        %868 = vmatprep.subr.mxu0 0.0
        %869 = vmatpush1.xpose.msra.mxu0 0.0
        %870 = vmatprep.subr.mxu0 0.0
        %871 = vmatpush1.xpose.msra.mxu0 0.0
        %872 = vmatprep.subr.mxu0 0.0
        %873 = vmatpush1.xpose.msra.mxu0 0.0
        %874 = vmatprep.subr.mxu0 0.0
        %875 = vmatpush1.xpose.msra.mxu0 0.0
        %876 = vmatprep.subr.mxu0 0.0
        %877 = vmatpush1.xpose.msra.mxu0 0.0
        %878 = vmatprep.subr.mxu0 0.0
        %879 = vmatpush1.xpose.msra.mxu0 0.0
        %880 = vmatprep.subr.mxu0 0.0
        %881 = vmatpush1.xpose.msra.mxu0 0.0
        %882 = vmatprep.subr.mxu0 0.0
        %883 = vmatpush1.xpose.msra.mxu0 0.0
        %884 = vmatprep.subr.mxu0 0.0
        %885 = vmatpush1.xpose.msra.mxu0 0.0
        %886 = vmatprep.subr.mxu0 0.0
        %887 = vmatpush1.xpose.msra.mxu0 0.0
        %888 = vmatprep.subr.mxu0 0.0
        %889 = vmatpush1.xpose.msra.mxu0 0.0
        %890 = vmatprep.subr.mxu0 0.0
        %891 = vmatpush1.xpose.msra.mxu0 0.0
        %892 = vmatprep.subr.mxu0 0.0
        %893 = vmatpush1.xpose.msra.mxu0 0.0
        %894 = vmatprep.subr.mxu0 0.0
        %895 = vmatpush1.xpose.msra.mxu0 0.0
        %896 = vmatprep.subr.mxu0 0.0
        %897 = vmatpush1.xpose.msra.mxu0 0.0
        %898 = vmatprep.subr.mxu0 0.0
        %899 = vmatpush1.xpose.msra.mxu0 0.0
        %900 = vmatprep.subr.mxu0 0.0
        %901 = vmatpush1.xpose.msra.mxu0 0.0
        %902 = vmatprep.subr.mxu0 0.0
        %903 = vmatpush1.xpose.msra.mxu0 0.0
        %904 = vmatprep.subr.mxu0 0.0
        %905 = vmatpush1.xpose.msra.mxu0 0.0
        %906 = vmatprep.subr.mxu0 0.0
        %907 = vmatpush1.xpose.msra.mxu0 0.0
        %908 = vmatprep.subr.mxu0 0.0
        %909 = vmatpush1.xpose.msra.mxu0 0.0
        %910 = vmatprep.subr.mxu0 0.0
        %911 = vmatpush1.xpose.msra.mxu0 0.0
        %912 = vmatprep.subr.mxu0 0.0
        %913 = vmatpush1.xpose.msra.mxu0 0.0
        %914 = vmatprep.subr.mxu0 0.0
        %915 = vmatpush1.xpose.msra.mxu0 0.0
        %916 = vmatprep.subr.mxu0 0.0
        %917 = vmatpush1.xpose.msra.mxu0 0.0
        %918 = vmatprep.subr.mxu0 0.0
        %919 = vmatpush1.xpose.msra.mxu0 0.0
        %920 = vmatprep.subr.mxu0 0.0
        %921 = vmatpush1.xpose.msra.mxu0 0.0
        %922 = vmatprep.mubr.f32.mxu0 0.0
        %923 = vmatmul.mubr.f32.gmra.mrb[0].mxu0 %v849
        %v924 = vpop.f32.mrb[0].mxu0
        %v925 = vadd.f32 0.0, %v924
        %v926 = vpop.f32.mrb[0].mxu0
        %927 = vmatprep.mubr.f32.mxu0 0.0
        %928 = vmatmul.mubr.f32.gmra.mrb[0].mxu0 %v852
        %v929 = vpop.f32.mrb[0].mxu0
        %v930 = vadd.f32 0.0, %v929
        %v931 = vpop.f32.mrb[0].mxu0
        %932 = vdwg.mxu0
        %v934 = vlaneseq
        %v935 = vshrl.u32 %v934, 7
        %v936 = vsub.s32 0, %v935
        %v937 = vrot.slane %v806, %v936
        %938 = vset.pattern.permute.xlu0 0
        %939 = vperm.xlu0 %938, %v937
        %v940 = vpop.permute.xlu0 %939
        %v942 = vmul.f32 %v925, %v940
        %v943 = vmul.f32 %v930, %v940
        %v944 = vld [vmem:[%s665] sm:$0xff]
        %v945 = vld [vmem:[%s665 + $0x8] sm:$0xff]
        %v946 = vadd.f32 %v942, %v944
        %v947 = vadd.f32 %v943, %v945
        %vm948 = vcmask 130048
        %v949 = vsel %vm948, %v946, -inf
        %950 = vmax.xlane.f32.xlu0 %v949
        %v951 = vpop.xlane.xlu0 %950
        %v952 = vsel %vm948, %v947, -inf
        %953 = vmax.xlane.f32.xlu0 %v952
        %v954 = vpop.xlane.xlu0 %953
        %v955 = vsub.f32 %v946, %v951
        %v956 = vsub.f32 %v947, %v954
        %v957 = vmul.f32 %v955, 1.442695
        %v958 = vpow.pop %v957
        %v959 = vmul.f32 %v956, 1.442695
        %v960 = vpow.pop %v959
        %v961 = vsel %vm948, %v958, 0.0
        %962 = vadd.xlane.f32.xlu0 %v961
        %v963 = vpop.xlane.xlu0 %962
        %v964 = vsel %vm948, %v960, 0.0
        %965 = vadd.xlane.f32.xlu0 %v964
        %v966 = vpop.xlane.xlu0 %965
        %v967 = vrcp.pop %v963
        %v968 = vmul.f32 %v958, %v967
        %v969 = vrcp.pop %v966
        %v970 = vmul.f32 %v960, %v969
        %973 = vrot.lane.b32.xlu0 %v798, 64
        %v974 = vpop.permute.xlu0 %973
        %975 = vrot.lane.b32.xlu0 %v803, 64
        %v976 = vpop.permute.xlu0 %975
        %v980 = vsel %vm948, %v968, 0
        %v983 = vsel %vm948, %v970, 0
        %985 = vmatprep.subr.mxu0 0.0
        %986 = vmatpush1.msra.mxu0 %v974
        %987 = vmatprep.subr.mxu0 0.0
        %988 = vmatpush1.msra.mxu0 %v976
        %989 = vmatprep.subr.mxu0 0.0
        %990 = vmatpush1.msra.mxu0 0.0
        %991 = vmatprep.subr.mxu0 0.0
        %992 = vmatpush1.msra.mxu0 0.0
        %993 = vmatprep.subr.mxu0 0.0
        %994 = vmatpush1.msra.mxu0 0.0
        %995 = vmatprep.subr.mxu0 0.0
        %996 = vmatpush1.msra.mxu0 0.0
        %997 = vmatprep.subr.mxu0 0.0
        %998 = vmatpush1.msra.mxu0 0.0
        %999 = vmatprep.subr.mxu0 0.0
        %1000 = vmatpush1.msra.mxu0 0.0
        %1001 = vmatprep.subr.mxu0 0.0
        %1002 = vmatpush1.msra.mxu0 0.0
        %1003 = vmatprep.subr.mxu0 0.0
        %1004 = vmatpush1.msra.mxu0 0.0
        %1005 = vmatprep.subr.mxu0 0.0
        %1006 = vmatpush1.msra.mxu0 0.0
        %1007 = vmatprep.subr.mxu0 0.0
        %1008 = vmatpush1.msra.mxu0 0.0
        %1009 = vmatprep.subr.mxu0 0.0
        %1010 = vmatpush1.msra.mxu0 0.0
        %1011 = vmatprep.subr.mxu0 0.0
        %1012 = vmatpush1.msra.mxu0 0.0
        %1013 = vmatprep.subr.mxu0 0.0
        %1014 = vmatpush1.msra.mxu0 0.0
        %1015 = vmatprep.subr.mxu0 0.0
        %1016 = vmatpush1.msra.mxu0 0.0
        %1017 = vmatprep.subr.mxu0 0.0
        %1018 = vmatpush1.msra.mxu0 0.0
        %1019 = vmatprep.subr.mxu0 0.0
        %1020 = vmatpush1.msra.mxu0 0.0
        %1021 = vmatprep.subr.mxu0 0.0
        %1022 = vmatpush1.msra.mxu0 0.0
        %1023 = vmatprep.subr.mxu0 0.0
        %1024 = vmatpush1.msra.mxu0 0.0
        %1025 = vmatprep.subr.mxu0 0.0
        %1026 = vmatpush1.msra.mxu0 0.0
        %1027 = vmatprep.subr.mxu0 0.0
        %1028 = vmatpush1.msra.mxu0 0.0
        %1029 = vmatprep.subr.mxu0 0.0
        %1030 = vmatpush1.msra.mxu0 0.0
        %1031 = vmatprep.subr.mxu0 0.0
        %1032 = vmatpush1.msra.mxu0 0.0
        %1033 = vmatprep.subr.mxu0 0.0
        %1034 = vmatpush1.msra.mxu0 0.0
        %1035 = vmatprep.subr.mxu0 0.0
        %1036 = vmatpush1.msra.mxu0 0.0
        %1037 = vmatprep.subr.mxu0 0.0
        %1038 = vmatpush1.msra.mxu0 0.0
        %1039 = vmatprep.subr.mxu0 0.0
        %1040 = vmatpush1.msra.mxu0 0.0
        %1041 = vmatprep.subr.mxu0 0.0
        %1042 = vmatpush1.msra.mxu0 0.0
        %1043 = vmatprep.subr.mxu0 0.0
        %1044 = vmatpush1.msra.mxu0 0.0
        %1045 = vmatprep.subr.mxu0 0.0
        %1046 = vmatpush1.msra.mxu0 0.0
        %1047 = vmatprep.subr.mxu0 0.0
        %1048 = vmatpush1.msra.mxu0 0.0
        %1049 = vmatprep.mubr.f32.mxu0 0.0
        %1050 = vmatmul.mubr.f32.gmra.mrb[0].mxu0 %v980
        %v1051 = vpop.f32.mrb[0].mxu0
        %v1052 = vadd.f32 0.0, %v1051
        %v1053 = vpop.f32.mrb[0].mxu0
        %1054 = vmatprep.mubr.f32.mxu0 0.0
        %1055 = vmatmul.mubr.f32.gmra.mrb[0].mxu0 %v983
        %v1056 = vpop.f32.mrb[0].mxu0
        %v1057 = vadd.f32 0.0, %v1056
        %v1058 = vpop.f32.mrb[0].mxu0
        %1059 = vdwg.mxu0
        %1060 = vrot.lane.b32.xlu0 %v807, 120
        %v1061 = vpop.permute.xlu0 %1060
        %1062 = vrot.lane.b32.xlu0 %v808, 120
        %v1063 = vpop.permute.xlu0 %1062
        %v1066 = vsel %vm809, %v1061, 0.0
        %1067 = vadd.xlane.f32.xlu0 %v1066
        %v1068 = vpop.xlane.xlu0 %1067
        %v1069 = vsel %vm809, %v1063, 0.0
        %1070 = vadd.xlane.f32.xlu0 %v1069
        %v1071 = vpop.xlane.xlu0 %1070
        %v1072 = vmax.f32 %v1068, 1e-24
        %v1073 = vmax.f32 %v1071, 1e-24
        %v1074 = vrsqrt.pop %v1072
        %v1075 = vrsqrt.pop %v1073
        %v1076 = vmul.f32 %v798, %v1074
        %v1077 = vmul.f32 %v803, %v1075
        %1078 = vrot.lane.b32.xlu0 %v807, 88
        %v1079 = vpop.permute.xlu0 %1078
        %1080 = vrot.lane.b32.xlu0 %v808, 88
        %v1081 = vpop.permute.xlu0 %1080
        %v1084 = vsel %vm809, %v1079, 0.0
        %1085 = vadd.xlane.f32.xlu0 %v1084
        %v1086 = vpop.xlane.xlu0 %1085
        %v1087 = vsel %vm809, %v1081, 0.0
        %1088 = vadd.xlane.f32.xlu0 %v1087
        %v1089 = vpop.xlane.xlu0 %1088
        %v1090 = vmax.f32 %v1086, 1e-24
        %v1091 = vmax.f32 %v1089, 1e-24
        %v1092 = vrsqrt.pop %v1090
        %v1093 = vrsqrt.pop %v1091
        %v1094 = vmul.f32 %v798, %v1092
        %v1095 = vmul.f32 %v803, %v1093
        %1098 = vrot.lane.b32.xlu0 %v1076, 120
        %v1099 = vpop.permute.xlu0 %1098
        %1100 = vrot.lane.b32.xlu0 %v1077, 120
        %v1101 = vpop.permute.xlu0 %1100
        %1104 = vrot.lane.b32.xlu0 %v1094, 88
        %v1105 = vpop.permute.xlu0 %1104
        %1106 = vrot.lane.b32.xlu0 %v1095, 88
        %v1107 = vpop.permute.xlu0 %1106
        %v1108 = vsel %vm809, %v1099, 0
        %v1110 = vsel %vm809, %v1101, 0
        %v1112 = vsel %vm809, %v1105, 0
        %v1114 = vsel %vm809, %v1107, 0
        %1116 = vmatprep.subr.mxu0 0.0
        %1117 = vmatpush1.xpose.msra.mxu0 %v1112
        %1118 = vmatprep.subr.mxu0 0.0
        %1119 = vmatpush1.xpose.msra.mxu0 %v1114
        %1120 = vmatprep.subr.mxu0 0.0
        %1121 = vmatpush1.xpose.msra.mxu0 0.0
        %1122 = vmatprep.subr.mxu0 0.0
        %1123 = vmatpush1.xpose.msra.mxu0 0.0
        %1124 = vmatprep.subr.mxu0 0.0
        %1125 = vmatpush1.xpose.msra.mxu0 0.0
        %1126 = vmatprep.subr.mxu0 0.0
        %1127 = vmatpush1.xpose.msra.mxu0 0.0
        %1128 = vmatprep.subr.mxu0 0.0
        %1129 = vmatpush1.xpose.msra.mxu0 0.0
        %1130 = vmatprep.subr.mxu0 0.0
        %1131 = vmatpush1.xpose.msra.mxu0 0.0
        %1132 = vmatprep.subr.mxu0 0.0
        %1133 = vmatpush1.xpose.msra.mxu0 0.0
        %1134 = vmatprep.subr.mxu0 0.0
        %1135 = vmatpush1.xpose.msra.mxu0 0.0
        %1136 = vmatprep.subr.mxu0 0.0
        %1137 = vmatpush1.xpose.msra.mxu0 0.0
        %1138 = vmatprep.subr.mxu0 0.0
        %1139 = vmatpush1.xpose.msra.mxu0 0.0
        %1140 = vmatprep.subr.mxu0 0.0
        %1141 = vmatpush1.xpose.msra.mxu0 0.0
        %1142 = vmatprep.subr.mxu0 0.0
        %1143 = vmatpush1.xpose.msra.mxu0 0.0
        %1144 = vmatprep.subr.mxu0 0.0
        %1145 = vmatpush1.xpose.msra.mxu0 0.0
        %1146 = vmatprep.subr.mxu0 0.0
        %1147 = vmatpush1.xpose.msra.mxu0 0.0
        %1148 = vmatprep.subr.mxu0 0.0
        %1149 = vmatpush1.xpose.msra.mxu0 0.0
        %1150 = vmatprep.subr.mxu0 0.0
        %1151 = vmatpush1.xpose.msra.mxu0 0.0
        %1152 = vmatprep.subr.mxu0 0.0
        %1153 = vmatpush1.xpose.msra.mxu0 0.0
        %1154 = vmatprep.subr.mxu0 0.0
        %1155 = vmatpush1.xpose.msra.mxu0 0.0
        %1156 = vmatprep.subr.mxu0 0.0
        %1157 = vmatpush1.xpose.msra.mxu0 0.0
        %1158 = vmatprep.subr.mxu0 0.0
        %1159 = vmatpush1.xpose.msra.mxu0 0.0
        %1160 = vmatprep.subr.mxu0 0.0
        %1161 = vmatpush1.xpose.msra.mxu0 0.0
        %1162 = vmatprep.subr.mxu0 0.0
        %1163 = vmatpush1.xpose.msra.mxu0 0.0
        %1164 = vmatprep.subr.mxu0 0.0
        %1165 = vmatpush1.xpose.msra.mxu0 0.0
        %1166 = vmatprep.subr.mxu0 0.0
        %1167 = vmatpush1.xpose.msra.mxu0 0.0
        %1168 = vmatprep.subr.mxu0 0.0
        %1169 = vmatpush1.xpose.msra.mxu0 0.0
        %1170 = vmatprep.subr.mxu0 0.0
        %1171 = vmatpush1.xpose.msra.mxu0 0.0
        %1172 = vmatprep.subr.mxu0 0.0
        %1173 = vmatpush1.xpose.msra.mxu0 0.0
        %1174 = vmatprep.subr.mxu0 0.0
        %1175 = vmatpush1.xpose.msra.mxu0 0.0
        %1176 = vmatprep.subr.mxu0 0.0
        %1177 = vmatpush1.xpose.msra.mxu0 0.0
        %1178 = vmatprep.subr.mxu0 0.0
        %1179 = vmatpush1.xpose.msra.mxu0 0.0
        %1180 = vmatprep.mubr.f32.mxu0 0.0
        %1181 = vmatmul.mubr.f32.gmra.mrb[0].mxu0 %v1108
        %v1182 = vpop.f32.mrb[0].mxu0
        %v1183 = vadd.f32 0.0, %v1182
        %v1184 = vpop.f32.mrb[0].mxu0
        %1185 = vmatprep.mubr.f32.mxu0 0.0
        %1186 = vmatmul.mubr.f32.gmra.mrb[0].mxu0 %v1110
        %v1187 = vpop.f32.mrb[0].mxu0
        %v1188 = vadd.f32 0.0, %v1187
        %v1189 = vpop.f32.mrb[0].mxu0
        %1190 = vdwg.mxu0
        %1191 = vset.pattern.permute.xlu0 1
        %1192 = vperm.xlu0 %1191, %v937
        %v1193 = vpop.permute.xlu0 %1192
        %v1195 = vmul.f32 %v1183, %v1193
        %v1196 = vmul.f32 %v1188, %v1193
        %s1197 = scalar_lea.vmem %s665, 16
        %v1198 = vld [vmem:[%s1197] sm:$0xff]
        %v1199 = vld [vmem:[%s1197 + $0x8] sm:$0xff]
        %v1200 = vadd.f32 %v1195, %v1198
        %v1201 = vadd.f32 %v1196, %v1199
        %v1202 = vsel %vm948, %v1200, -inf
        %1203 = vmax.xlane.f32.xlu0 %v1202
        %v1204 = vpop.xlane.xlu0 %1203
        %v1205 = vsel %vm948, %v1201, -inf
        %1206 = vmax.xlane.f32.xlu0 %v1205
        %v1207 = vpop.xlane.xlu0 %1206
        %v1208 = vsub.f32 %v1200, %v1204
        %v1209 = vsub.f32 %v1201, %v1207
        %v1210 = vmul.f32 %v1208, 1.442695
        %v1211 = vpow.pop %v1210
        %v1212 = vmul.f32 %v1209, 1.442695
        %v1213 = vpow.pop %v1212
        %v1214 = vsel %vm948, %v1211, 0.0
        %1215 = vadd.xlane.f32.xlu0 %v1214
        %v1216 = vpop.xlane.xlu0 %1215
        %v1217 = vsel %vm948, %v1213, 0.0
        %1218 = vadd.xlane.f32.xlu0 %v1217
        %v1219 = vpop.xlane.xlu0 %1218
        %v1220 = vrcp.pop %v1216
        %v1221 = vmul.f32 %v1211, %v1220
        %v1222 = vrcp.pop %v1219
        %v1223 = vmul.f32 %v1213, %v1222
        %1224 = vrot.lane.b32.xlu0 %v798, 56
        %v1225 = vpop.permute.xlu0 %1224
        %1226 = vrot.lane.b32.xlu0 %v803, 56
        %v1227 = vpop.permute.xlu0 %1226
        %v1231 = vsel %vm948, %v1221, 0
        %v1234 = vsel %vm948, %v1223, 0
        %1236 = vmatprep.subr.mxu0 0.0
        %1237 = vmatpush1.msra.mxu0 %v1225
        %1238 = vmatprep.subr.mxu0 0.0
        %1239 = vmatpush1.msra.mxu0 %v1227
        %1240 = vmatprep.subr.mxu0 0.0
        %1241 = vmatpush1.msra.mxu0 0.0
        %1242 = vmatprep.subr.mxu0 0.0
        %1243 = vmatpush1.msra.mxu0 0.0
        %1244 = vmatprep.subr.mxu0 0.0
        %1245 = vmatpush1.msra.mxu0 0.0
        %1246 = vmatprep.subr.mxu0 0.0
        %1247 = vmatpush1.msra.mxu0 0.0
        %1248 = vmatprep.subr.mxu0 0.0
        %1249 = vmatpush1.msra.mxu0 0.0
        %1250 = vmatprep.subr.mxu0 0.0
        %1251 = vmatpush1.msra.mxu0 0.0
        %1252 = vmatprep.subr.mxu0 0.0
        %1253 = vmatpush1.msra.mxu0 0.0
        %1254 = vmatprep.subr.mxu0 0.0
        %1255 = vmatpush1.msra.mxu0 0.0
        %1256 = vmatprep.subr.mxu0 0.0
        %1257 = vmatpush1.msra.mxu0 0.0
        %1258 = vmatprep.subr.mxu0 0.0
        %1259 = vmatpush1.msra.mxu0 0.0
        %1260 = vmatprep.subr.mxu0 0.0
        %1261 = vmatpush1.msra.mxu0 0.0
        %1262 = vmatprep.subr.mxu0 0.0
        %1263 = vmatpush1.msra.mxu0 0.0
        %1264 = vmatprep.subr.mxu0 0.0
        %1265 = vmatpush1.msra.mxu0 0.0
        %1266 = vmatprep.subr.mxu0 0.0
        %1267 = vmatpush1.msra.mxu0 0.0
        %1268 = vmatprep.subr.mxu0 0.0
        %1269 = vmatpush1.msra.mxu0 0.0
        %1270 = vmatprep.subr.mxu0 0.0
        %1271 = vmatpush1.msra.mxu0 0.0
        %1272 = vmatprep.subr.mxu0 0.0
        %1273 = vmatpush1.msra.mxu0 0.0
        %1274 = vmatprep.subr.mxu0 0.0
        %1275 = vmatpush1.msra.mxu0 0.0
        %1276 = vmatprep.subr.mxu0 0.0
        %1277 = vmatpush1.msra.mxu0 0.0
        %1278 = vmatprep.subr.mxu0 0.0
        %1279 = vmatpush1.msra.mxu0 0.0
        %1280 = vmatprep.subr.mxu0 0.0
        %1281 = vmatpush1.msra.mxu0 0.0
        %1282 = vmatprep.subr.mxu0 0.0
        %1283 = vmatpush1.msra.mxu0 0.0
        %1284 = vmatprep.subr.mxu0 0.0
        %1285 = vmatpush1.msra.mxu0 0.0
        %1286 = vmatprep.subr.mxu0 0.0
        %1287 = vmatpush1.msra.mxu0 0.0
        %1288 = vmatprep.subr.mxu0 0.0
        %1289 = vmatpush1.msra.mxu0 0.0
        %1290 = vmatprep.subr.mxu0 0.0
        %1291 = vmatpush1.msra.mxu0 0.0
        %1292 = vmatprep.subr.mxu0 0.0
        %1293 = vmatpush1.msra.mxu0 0.0
        %1294 = vmatprep.subr.mxu0 0.0
        %1295 = vmatpush1.msra.mxu0 0.0
        %1296 = vmatprep.subr.mxu0 0.0
        %1297 = vmatpush1.msra.mxu0 0.0
        %1298 = vmatprep.subr.mxu0 0.0
        %1299 = vmatpush1.msra.mxu0 0.0
        %1300 = vmatprep.mubr.f32.mxu0 0.0
        %1301 = vmatmul.mubr.f32.gmra.mrb[0].mxu0 %v1231
        %v1302 = vpop.f32.mrb[0].mxu0
        %v1303 = vadd.f32 0.0, %v1302
        %v1304 = vpop.f32.mrb[0].mxu0
        %1305 = vmatprep.mubr.f32.mxu0 0.0
        %1306 = vmatmul.mubr.f32.gmra.mrb[0].mxu0 %v1234
        %v1307 = vpop.f32.mrb[0].mxu0
        %v1308 = vadd.f32 0.0, %v1307
        %v1309 = vpop.f32.mrb[0].mxu0
        %1310 = vdwg.mxu0
        %1311 = vrot.lane.b32.xlu0 %v807, 112
        %v1312 = vpop.permute.xlu0 %1311
        %1313 = vrot.lane.b32.xlu0 %v808, 112
        %v1314 = vpop.permute.xlu0 %1313
        %v1317 = vsel %vm809, %v1312, 0.0
        %1318 = vadd.xlane.f32.xlu0 %v1317
        %v1319 = vpop.xlane.xlu0 %1318
        %v1320 = vsel %vm809, %v1314, 0.0
        %1321 = vadd.xlane.f32.xlu0 %v1320
        %v1322 = vpop.xlane.xlu0 %1321
        %v1323 = vmax.f32 %v1319, 1e-24
        %v1324 = vmax.f32 %v1322, 1e-24
        %v1325 = vrsqrt.pop %v1323
        %v1326 = vrsqrt.pop %v1324
        %v1327 = vmul.f32 %v798, %v1325
        %v1328 = vmul.f32 %v803, %v1326
        %1329 = vrot.lane.b32.xlu0 %v807, 80
        %v1330 = vpop.permute.xlu0 %1329
        %1331 = vrot.lane.b32.xlu0 %v808, 80
        %v1332 = vpop.permute.xlu0 %1331
        %v1335 = vsel %vm809, %v1330, 0.0
        %1336 = vadd.xlane.f32.xlu0 %v1335
        %v1337 = vpop.xlane.xlu0 %1336
        %v1338 = vsel %vm809, %v1332, 0.0
        %1339 = vadd.xlane.f32.xlu0 %v1338
        %v1340 = vpop.xlane.xlu0 %1339
        %v1341 = vmax.f32 %v1337, 1e-24
        %v1342 = vmax.f32 %v1340, 1e-24
        %v1343 = vrsqrt.pop %v1341
        %v1344 = vrsqrt.pop %v1342
        %v1345 = vmul.f32 %v798, %v1343
        %v1346 = vmul.f32 %v803, %v1344
        %1349 = vrot.lane.b32.xlu0 %v1327, 112
        %v1350 = vpop.permute.xlu0 %1349
        %1351 = vrot.lane.b32.xlu0 %v1328, 112
        %v1352 = vpop.permute.xlu0 %1351
        %1355 = vrot.lane.b32.xlu0 %v1345, 80
        %v1356 = vpop.permute.xlu0 %1355
        %1357 = vrot.lane.b32.xlu0 %v1346, 80
        %v1358 = vpop.permute.xlu0 %1357
        %v1359 = vsel %vm809, %v1350, 0
        %v1361 = vsel %vm809, %v1352, 0
        %v1363 = vsel %vm809, %v1356, 0
        %v1365 = vsel %vm809, %v1358, 0
        %1367 = vmatprep.subr.mxu0 0.0
        %1368 = vmatpush1.xpose.msra.mxu0 %v1363
        %1369 = vmatprep.subr.mxu0 0.0
        %1370 = vmatpush1.xpose.msra.mxu0 %v1365
        %1371 = vmatprep.subr.mxu0 0.0
        %1372 = vmatpush1.xpose.msra.mxu0 0.0
        %1373 = vmatprep.subr.mxu0 0.0
        %1374 = vmatpush1.xpose.msra.mxu0 0.0
        %1375 = vmatprep.subr.mxu0 0.0
        %1376 = vmatpush1.xpose.msra.mxu0 0.0
        %1377 = vmatprep.subr.mxu0 0.0
        %1378 = vmatpush1.xpose.msra.mxu0 0.0
        %1379 = vmatprep.subr.mxu0 0.0
        %1380 = vmatpush1.xpose.msra.mxu0 0.0
        %1381 = vmatprep.subr.mxu0 0.0
        %1382 = vmatpush1.xpose.msra.mxu0 0.0
        %1383 = vmatprep.subr.mxu0 0.0
        %1384 = vmatpush1.xpose.msra.mxu0 0.0
        %1385 = vmatprep.subr.mxu0 0.0
        %1386 = vmatpush1.xpose.msra.mxu0 0.0
        %1387 = vmatprep.subr.mxu0 0.0
        %1388 = vmatpush1.xpose.msra.mxu0 0.0
        %1389 = vmatprep.subr.mxu0 0.0
        %1390 = vmatpush1.xpose.msra.mxu0 0.0
        %1391 = vmatprep.subr.mxu0 0.0
        %1392 = vmatpush1.xpose.msra.mxu0 0.0
        %1393 = vmatprep.subr.mxu0 0.0
        %1394 = vmatpush1.xpose.msra.mxu0 0.0
        %1395 = vmatprep.subr.mxu0 0.0
        %1396 = vmatpush1.xpose.msra.mxu0 0.0
        %1397 = vmatprep.subr.mxu0 0.0
        %1398 = vmatpush1.xpose.msra.mxu0 0.0
        %1399 = vmatprep.subr.mxu0 0.0
        %1400 = vmatpush1.xpose.msra.mxu0 0.0
        %1401 = vmatprep.subr.mxu0 0.0
        %1402 = vmatpush1.xpose.msra.mxu0 0.0
        %1403 = vmatprep.subr.mxu0 0.0
        %1404 = vmatpush1.xpose.msra.mxu0 0.0
        %1405 = vmatprep.subr.mxu0 0.0
        %1406 = vmatpush1.xpose.msra.mxu0 0.0
        %1407 = vmatprep.subr.mxu0 0.0
        %1408 = vmatpush1.xpose.msra.mxu0 0.0
        %1409 = vmatprep.subr.mxu0 0.0
        %1410 = vmatpush1.xpose.msra.mxu0 0.0
        %1411 = vmatprep.subr.mxu0 0.0
        %1412 = vmatpush1.xpose.msra.mxu0 0.0
        %1413 = vmatprep.subr.mxu0 0.0
        %1414 = vmatpush1.xpose.msra.mxu0 0.0
        %1415 = vmatprep.subr.mxu0 0.0
        %1416 = vmatpush1.xpose.msra.mxu0 0.0
        %1417 = vmatprep.subr.mxu0 0.0
        %1418 = vmatpush1.xpose.msra.mxu0 0.0
        %1419 = vmatprep.subr.mxu0 0.0
        %1420 = vmatpush1.xpose.msra.mxu0 0.0
        %1421 = vmatprep.subr.mxu0 0.0
        %1422 = vmatpush1.xpose.msra.mxu0 0.0
        %1423 = vmatprep.subr.mxu0 0.0
        %1424 = vmatpush1.xpose.msra.mxu0 0.0
        %1425 = vmatprep.subr.mxu0 0.0
        %1426 = vmatpush1.xpose.msra.mxu0 0.0
        %1427 = vmatprep.subr.mxu0 0.0
        %1428 = vmatpush1.xpose.msra.mxu0 0.0
        %1429 = vmatprep.subr.mxu0 0.0
        %1430 = vmatpush1.xpose.msra.mxu0 0.0
        %1431 = vmatprep.mubr.f32.mxu0 0.0
        %1432 = vmatmul.mubr.f32.gmra.mrb[0].mxu0 %v1359
        %v1433 = vpop.f32.mrb[0].mxu0
        %v1434 = vadd.f32 0.0, %v1433
        %v1435 = vpop.f32.mrb[0].mxu0
        %1436 = vmatprep.mubr.f32.mxu0 0.0
        %1437 = vmatmul.mubr.f32.gmra.mrb[0].mxu0 %v1361
        %v1438 = vpop.f32.mrb[0].mxu0
        %v1439 = vadd.f32 0.0, %v1438
        %v1440 = vpop.f32.mrb[0].mxu0
        %1441 = vdwg.mxu0
        %1442 = vset.pattern.permute.xlu0 2
        %1443 = vperm.xlu0 %1442, %v937
        %v1444 = vpop.permute.xlu0 %1443
        %v1446 = vmul.f32 %v1434, %v1444
        %v1447 = vmul.f32 %v1439, %v1444
        %s1448 = scalar_lea.vmem %s665, 32
        %v1449 = vld [vmem:[%s1448] sm:$0xff]
        %v1450 = vld [vmem:[%s1448 + $0x8] sm:$0xff]
        %v1451 = vadd.f32 %v1446, %v1449
        %v1452 = vadd.f32 %v1447, %v1450
        %v1453 = vsel %vm948, %v1451, -inf
        %1454 = vmax.xlane.f32.xlu0 %v1453
        %v1455 = vpop.xlane.xlu0 %1454
        %v1456 = vsel %vm948, %v1452, -inf
        %1457 = vmax.xlane.f32.xlu0 %v1456
        %v1458 = vpop.xlane.xlu0 %1457
        %v1459 = vsub.f32 %v1451, %v1455
        %v1460 = vsub.f32 %v1452, %v1458
        %v1461 = vmul.f32 %v1459, 1.442695
        %v1462 = vpow.pop %v1461
        %v1463 = vmul.f32 %v1460, 1.442695
        %v1464 = vpow.pop %v1463
        %v1465 = vsel %vm948, %v1462, 0.0
        %1466 = vadd.xlane.f32.xlu0 %v1465
        %v1467 = vpop.xlane.xlu0 %1466
        %v1468 = vsel %vm948, %v1464, 0.0
        %1469 = vadd.xlane.f32.xlu0 %v1468
        %v1470 = vpop.xlane.xlu0 %1469
        %v1471 = vrcp.pop %v1467
        %v1472 = vmul.f32 %v1462, %v1471
        %v1473 = vrcp.pop %v1470
        %v1474 = vmul.f32 %v1464, %v1473
        %1475 = vrot.lane.b32.xlu0 %v798, 48
        %v1476 = vpop.permute.xlu0 %1475
        %1477 = vrot.lane.b32.xlu0 %v803, 48
        %v1478 = vpop.permute.xlu0 %1477
        %v1482 = vsel %vm948, %v1472, 0
        %v1485 = vsel %vm948, %v1474, 0
        %1487 = vmatprep.subr.mxu0 0.0
        %1488 = vmatpush1.msra.mxu0 %v1476
        %1489 = vmatprep.subr.mxu0 0.0
        %1490 = vmatpush1.msra.mxu0 %v1478
        %1491 = vmatprep.subr.mxu0 0.0
        %1492 = vmatpush1.msra.mxu0 0.0
        %1493 = vmatprep.subr.mxu0 0.0
        %1494 = vmatpush1.msra.mxu0 0.0
        %1495 = vmatprep.subr.mxu0 0.0
        %1496 = vmatpush1.msra.mxu0 0.0
        %1497 = vmatprep.subr.mxu0 0.0
        %1498 = vmatpush1.msra.mxu0 0.0
        %1499 = vmatprep.subr.mxu0 0.0
        %1500 = vmatpush1.msra.mxu0 0.0
        %1501 = vmatprep.subr.mxu0 0.0
        %1502 = vmatpush1.msra.mxu0 0.0
        %1503 = vmatprep.subr.mxu0 0.0
        %1504 = vmatpush1.msra.mxu0 0.0
        %1505 = vmatprep.subr.mxu0 0.0
        %1506 = vmatpush1.msra.mxu0 0.0
        %1507 = vmatprep.subr.mxu0 0.0
        %1508 = vmatpush1.msra.mxu0 0.0
        %1509 = vmatprep.subr.mxu0 0.0
        %1510 = vmatpush1.msra.mxu0 0.0
        %1511 = vmatprep.subr.mxu0 0.0
        %1512 = vmatpush1.msra.mxu0 0.0
        %1513 = vmatprep.subr.mxu0 0.0
        %1514 = vmatpush1.msra.mxu0 0.0
        %1515 = vmatprep.subr.mxu0 0.0
        %1516 = vmatpush1.msra.mxu0 0.0
        %1517 = vmatprep.subr.mxu0 0.0
        %1518 = vmatpush1.msra.mxu0 0.0
        %1519 = vmatprep.subr.mxu0 0.0
        %1520 = vmatpush1.msra.mxu0 0.0
        %1521 = vmatprep.subr.mxu0 0.0
        %1522 = vmatpush1.msra.mxu0 0.0
        %1523 = vmatprep.subr.mxu0 0.0
        %1524 = vmatpush1.msra.mxu0 0.0
        %1525 = vmatprep.subr.mxu0 0.0
        %1526 = vmatpush1.msra.mxu0 0.0
        %1527 = vmatprep.subr.mxu0 0.0
        %1528 = vmatpush1.msra.mxu0 0.0
        %1529 = vmatprep.subr.mxu0 0.0
        %1530 = vmatpush1.msra.mxu0 0.0
        %1531 = vmatprep.subr.mxu0 0.0
        %1532 = vmatpush1.msra.mxu0 0.0
        %1533 = vmatprep.subr.mxu0 0.0
        %1534 = vmatpush1.msra.mxu0 0.0
        %1535 = vmatprep.subr.mxu0 0.0
        %1536 = vmatpush1.msra.mxu0 0.0
        %1537 = vmatprep.subr.mxu0 0.0
        %1538 = vmatpush1.msra.mxu0 0.0
        %1539 = vmatprep.subr.mxu0 0.0
        %1540 = vmatpush1.msra.mxu0 0.0
        %1541 = vmatprep.subr.mxu0 0.0
        %1542 = vmatpush1.msra.mxu0 0.0
        %1543 = vmatprep.subr.mxu0 0.0
        %1544 = vmatpush1.msra.mxu0 0.0
        %1545 = vmatprep.subr.mxu0 0.0
        %1546 = vmatpush1.msra.mxu0 0.0
        %1547 = vmatprep.subr.mxu0 0.0
        %1548 = vmatpush1.msra.mxu0 0.0
        %1549 = vmatprep.subr.mxu0 0.0
        %1550 = vmatpush1.msra.mxu0 0.0
        %1551 = vmatprep.mubr.f32.mxu0 0.0
        %1552 = vmatmul.mubr.f32.gmra.mrb[0].mxu0 %v1482
        %v1553 = vpop.f32.mrb[0].mxu0
        %v1554 = vadd.f32 0.0, %v1553
        %v1555 = vpop.f32.mrb[0].mxu0
        %1556 = vmatprep.mubr.f32.mxu0 0.0
        %1557 = vmatmul.mubr.f32.gmra.mrb[0].mxu0 %v1485
        %v1558 = vpop.f32.mrb[0].mxu0
        %v1559 = vadd.f32 0.0, %v1558
        %v1560 = vpop.f32.mrb[0].mxu0
        %1561 = vdwg.mxu0
        %1562 = vrot.lane.b32.xlu0 %v807, 104
        %v1563 = vpop.permute.xlu0 %1562
        %1564 = vrot.lane.b32.xlu0 %v808, 104
        %v1565 = vpop.permute.xlu0 %1564
        %v1568 = vsel %vm809, %v1563, 0.0
        %1569 = vadd.xlane.f32.xlu0 %v1568
        %v1570 = vpop.xlane.xlu0 %1569
        %v1571 = vsel %vm809, %v1565, 0.0
        %1572 = vadd.xlane.f32.xlu0 %v1571
        %v1573 = vpop.xlane.xlu0 %1572
        %v1574 = vmax.f32 %v1570, 1e-24
        %v1575 = vmax.f32 %v1573, 1e-24
        %v1576 = vrsqrt.pop %v1574
        %v1577 = vrsqrt.pop %v1575
        %v1578 = vmul.f32 %v798, %v1576
        %v1579 = vmul.f32 %v803, %v1577
        %1580 = vrot.lane.b32.xlu0 %v807, 72
        %v1581 = vpop.permute.xlu0 %1580
        %1582 = vrot.lane.b32.xlu0 %v808, 72
        %v1583 = vpop.permute.xlu0 %1582
        %v1586 = vsel %vm809, %v1581, 0.0
        %1587 = vadd.xlane.f32.xlu0 %v1586
        %v1588 = vpop.xlane.xlu0 %1587
        %v1589 = vsel %vm809, %v1583, 0.0
        %1590 = vadd.xlane.f32.xlu0 %v1589
        %v1591 = vpop.xlane.xlu0 %1590
        %v1592 = vmax.f32 %v1588, 1e-24
        %v1593 = vmax.f32 %v1591, 1e-24
        %v1594 = vrsqrt.pop %v1592
        %v1595 = vrsqrt.pop %v1593
        %v1596 = vmul.f32 %v798, %v1594
        %v1597 = vmul.f32 %v803, %v1595
        %1600 = vrot.lane.b32.xlu0 %v1578, 104
        %v1601 = vpop.permute.xlu0 %1600
        %1602 = vrot.lane.b32.xlu0 %v1579, 104
        %v1603 = vpop.permute.xlu0 %1602
        %1606 = vrot.lane.b32.xlu0 %v1596, 72
        %v1607 = vpop.permute.xlu0 %1606
        %1608 = vrot.lane.b32.xlu0 %v1597, 72
        %v1609 = vpop.permute.xlu0 %1608
        %v1610 = vsel %vm809, %v1601, 0
        %v1612 = vsel %vm809, %v1603, 0
        %v1614 = vsel %vm809, %v1607, 0
        %v1616 = vsel %vm809, %v1609, 0
        %1618 = vmatprep.subr.mxu0 0.0
        %1619 = vmatpush1.xpose.msra.mxu0 %v1614
        %1620 = vmatprep.subr.mxu0 0.0
        %1621 = vmatpush1.xpose.msra.mxu0 %v1616
        %1622 = vmatprep.subr.mxu0 0.0
        %1623 = vmatpush1.xpose.msra.mxu0 0.0
        %1624 = vmatprep.subr.mxu0 0.0
        %1625 = vmatpush1.xpose.msra.mxu0 0.0
        %1626 = vmatprep.subr.mxu0 0.0
        %1627 = vmatpush1.xpose.msra.mxu0 0.0
        %1628 = vmatprep.subr.mxu0 0.0
        %1629 = vmatpush1.xpose.msra.mxu0 0.0
        %1630 = vmatprep.subr.mxu0 0.0
        %1631 = vmatpush1.xpose.msra.mxu0 0.0
        %1632 = vmatprep.subr.mxu0 0.0
        %1633 = vmatpush1.xpose.msra.mxu0 0.0
        %1634 = vmatprep.subr.mxu0 0.0
        %1635 = vmatpush1.xpose.msra.mxu0 0.0
        %1636 = vmatprep.subr.mxu0 0.0
        %1637 = vmatpush1.xpose.msra.mxu0 0.0
        %1638 = vmatprep.subr.mxu0 0.0
        %1639 = vmatpush1.xpose.msra.mxu0 0.0
        %1640 = vmatprep.subr.mxu0 0.0
        %1641 = vmatpush1.xpose.msra.mxu0 0.0
        %1642 = vmatprep.subr.mxu0 0.0
        %1643 = vmatpush1.xpose.msra.mxu0 0.0
        %1644 = vmatprep.subr.mxu0 0.0
        %1645 = vmatpush1.xpose.msra.mxu0 0.0
        %1646 = vmatprep.subr.mxu0 0.0
        %1647 = vmatpush1.xpose.msra.mxu0 0.0
        %1648 = vmatprep.subr.mxu0 0.0
        %1649 = vmatpush1.xpose.msra.mxu0 0.0
        %1650 = vmatprep.subr.mxu0 0.0
        %1651 = vmatpush1.xpose.msra.mxu0 0.0
        %1652 = vmatprep.subr.mxu0 0.0
        %1653 = vmatpush1.xpose.msra.mxu0 0.0
        %1654 = vmatprep.subr.mxu0 0.0
        %1655 = vmatpush1.xpose.msra.mxu0 0.0
        %1656 = vmatprep.subr.mxu0 0.0
        %1657 = vmatpush1.xpose.msra.mxu0 0.0
        %1658 = vmatprep.subr.mxu0 0.0
        %1659 = vmatpush1.xpose.msra.mxu0 0.0
        %1660 = vmatprep.subr.mxu0 0.0
        %1661 = vmatpush1.xpose.msra.mxu0 0.0
        %1662 = vmatprep.subr.mxu0 0.0
        %1663 = vmatpush1.xpose.msra.mxu0 0.0
        %1664 = vmatprep.subr.mxu0 0.0
        %1665 = vmatpush1.xpose.msra.mxu0 0.0
        %1666 = vmatprep.subr.mxu0 0.0
        %1667 = vmatpush1.xpose.msra.mxu0 0.0
        %1668 = vmatprep.subr.mxu0 0.0
        %1669 = vmatpush1.xpose.msra.mxu0 0.0
        %1670 = vmatprep.subr.mxu0 0.0
        %1671 = vmatpush1.xpose.msra.mxu0 0.0
        %1672 = vmatprep.subr.mxu0 0.0
        %1673 = vmatpush1.xpose.msra.mxu0 0.0
        %1674 = vmatprep.subr.mxu0 0.0
        %1675 = vmatpush1.xpose.msra.mxu0 0.0
        %1676 = vmatprep.subr.mxu0 0.0
        %1677 = vmatpush1.xpose.msra.mxu0 0.0
        %1678 = vmatprep.subr.mxu0 0.0
        %1679 = vmatpush1.xpose.msra.mxu0 0.0
        %1680 = vmatprep.subr.mxu0 0.0
        %1681 = vmatpush1.xpose.msra.mxu0 0.0
        %1682 = vmatprep.mubr.f32.mxu0 0.0
        %1683 = vmatmul.mubr.f32.gmra.mrb[0].mxu0 %v1610
        %v1684 = vpop.f32.mrb[0].mxu0
        %v1685 = vadd.f32 0.0, %v1684
        %v1686 = vpop.f32.mrb[0].mxu0
        %1687 = vmatprep.mubr.f32.mxu0 0.0
        %1688 = vmatmul.mubr.f32.gmra.mrb[0].mxu0 %v1612
        %v1689 = vpop.f32.mrb[0].mxu0
        %v1690 = vadd.f32 0.0, %v1689
        %v1691 = vpop.f32.mrb[0].mxu0
        %1692 = vdwg.mxu0
        %1693 = vset.pattern.permute.xlu0 3
        %1694 = vperm.xlu0 %1693, %v937
        %v1695 = vpop.permute.xlu0 %1694
        %v1697 = vmul.f32 %v1685, %v1695
        %v1698 = vmul.f32 %v1690, %v1695
        %s1699 = scalar_lea.vmem %s665, 48
        %v1700 = vld [vmem:[%s1699] sm:$0xff]
        %v1701 = vld [vmem:[%s1699 + $0x8] sm:$0xff]
        %v1702 = vadd.f32 %v1697, %v1700
        %v1703 = vadd.f32 %v1698, %v1701
        %v1704 = vsel %vm948, %v1702, -inf
        %1705 = vmax.xlane.f32.xlu0 %v1704
        %v1706 = vpop.xlane.xlu0 %1705
        %v1707 = vsel %vm948, %v1703, -inf
        %1708 = vmax.xlane.f32.xlu0 %v1707
        %v1709 = vpop.xlane.xlu0 %1708
        %v1710 = vsub.f32 %v1702, %v1706
        %v1711 = vsub.f32 %v1703, %v1709
        %v1712 = vmul.f32 %v1710, 1.442695
        %v1713 = vpow.pop %v1712
        %v1714 = vmul.f32 %v1711, 1.442695
        %v1715 = vpow.pop %v1714
        %v1716 = vsel %vm948, %v1713, 0.0
        %1717 = vadd.xlane.f32.xlu0 %v1716
        %v1718 = vpop.xlane.xlu0 %1717
        %v1719 = vsel %vm948, %v1715, 0.0
        %1720 = vadd.xlane.f32.xlu0 %v1719
        %v1721 = vpop.xlane.xlu0 %1720
        %v1722 = vrcp.pop %v1718
        %v1723 = vmul.f32 %v1713, %v1722
        %v1724 = vrcp.pop %v1721
        %v1725 = vmul.f32 %v1715, %v1724
        %1726 = vrot.lane.b32.xlu0 %v798, 40
        %v1727 = vpop.permute.xlu0 %1726
        %1728 = vrot.lane.b32.xlu0 %v803, 40
        %v1729 = vpop.permute.xlu0 %1728
        %v1733 = vsel %vm948, %v1723, 0
        %v1736 = vsel %vm948, %v1725, 0
        %1738 = vmatprep.subr.mxu0 0.0
        %1739 = vmatpush1.msra.mxu0 %v1727
        %1740 = vmatprep.subr.mxu0 0.0
        %1741 = vmatpush1.msra.mxu0 %v1729
        %1742 = vmatprep.subr.mxu0 0.0
        %1743 = vmatpush1.msra.mxu0 0.0
        %1744 = vmatprep.subr.mxu0 0.0
        %1745 = vmatpush1.msra.mxu0 0.0
        %1746 = vmatprep.subr.mxu0 0.0
        %1747 = vmatpush1.msra.mxu0 0.0
        %1748 = vmatprep.subr.mxu0 0.0
        %1749 = vmatpush1.msra.mxu0 0.0
        %1750 = vmatprep.subr.mxu0 0.0
        %1751 = vmatpush1.msra.mxu0 0.0
        %1752 = vmatprep.subr.mxu0 0.0
        %1753 = vmatpush1.msra.mxu0 0.0
        %1754 = vmatprep.subr.mxu0 0.0
        %1755 = vmatpush1.msra.mxu0 0.0
        %1756 = vmatprep.subr.mxu0 0.0
        %1757 = vmatpush1.msra.mxu0 0.0
        %1758 = vmatprep.subr.mxu0 0.0
        %1759 = vmatpush1.msra.mxu0 0.0
        %1760 = vmatprep.subr.mxu0 0.0
        %1761 = vmatpush1.msra.mxu0 0.0
        %1762 = vmatprep.subr.mxu0 0.0
        %1763 = vmatpush1.msra.mxu0 0.0
        %1764 = vmatprep.subr.mxu0 0.0
        %1765 = vmatpush1.msra.mxu0 0.0
        %1766 = vmatprep.subr.mxu0 0.0
        %1767 = vmatpush1.msra.mxu0 0.0
        %1768 = vmatprep.subr.mxu0 0.0
        %1769 = vmatpush1.msra.mxu0 0.0
        %1770 = vmatprep.subr.mxu0 0.0
        %1771 = vmatpush1.msra.mxu0 0.0
        %1772 = vmatprep.subr.mxu0 0.0
        %1773 = vmatpush1.msra.mxu0 0.0
        %1774 = vmatprep.subr.mxu0 0.0
        %1775 = vmatpush1.msra.mxu0 0.0
        %1776 = vmatprep.subr.mxu0 0.0
        %1777 = vmatpush1.msra.mxu0 0.0
        %1778 = vmatprep.subr.mxu0 0.0
        %1779 = vmatpush1.msra.mxu0 0.0
        %1780 = vmatprep.subr.mxu0 0.0
        %1781 = vmatpush1.msra.mxu0 0.0
        %1782 = vmatprep.subr.mxu0 0.0
        %1783 = vmatpush1.msra.mxu0 0.0
        %1784 = vmatprep.subr.mxu0 0.0
        %1785 = vmatpush1.msra.mxu0 0.0
        %1786 = vmatprep.subr.mxu0 0.0
        %1787 = vmatpush1.msra.mxu0 0.0
        %1788 = vmatprep.subr.mxu0 0.0
        %1789 = vmatpush1.msra.mxu0 0.0
        %1790 = vmatprep.subr.mxu0 0.0
        %1791 = vmatpush1.msra.mxu0 0.0
        %1792 = vmatprep.subr.mxu0 0.0
        %1793 = vmatpush1.msra.mxu0 0.0
        %1794 = vmatprep.subr.mxu0 0.0
        %1795 = vmatpush1.msra.mxu0 0.0
        %1796 = vmatprep.subr.mxu0 0.0
        %1797 = vmatpush1.msra.mxu0 0.0
        %1798 = vmatprep.subr.mxu0 0.0
        %1799 = vmatpush1.msra.mxu0 0.0
        %1800 = vmatprep.subr.mxu0 0.0
        %1801 = vmatpush1.msra.mxu0 0.0
        %1802 = vmatprep.mubr.f32.mxu0 0.0
        %1803 = vmatmul.mubr.f32.gmra.mrb[0].mxu0 %v1733
        %v1804 = vpop.f32.mrb[0].mxu0
        %v1805 = vadd.f32 0.0, %v1804
        %v1806 = vpop.f32.mrb[0].mxu0
        %1807 = vmatprep.mubr.f32.mxu0 0.0
        %1808 = vmatmul.mubr.f32.gmra.mrb[0].mxu0 %v1736
        %v1809 = vpop.f32.mrb[0].mxu0
        %v1810 = vadd.f32 0.0, %v1809
        %v1811 = vpop.f32.mrb[0].mxu0
        %1812 = vdwg.mxu0
        %1815 = vrot.lane.b32.xlu0 %v1303, 8
        %v1816 = vpop.permute.xlu0 %1815
        %1817 = vrot.lane.b32.xlu0 %v1308, 8
        %v1818 = vpop.permute.xlu0 %1817
        %1823 = vrot.lane.b32.xlu0 %v1554, 16
        %v1824 = vpop.permute.xlu0 %1823
        %1825 = vrot.lane.b32.xlu0 %v1559, 16
        %v1826 = vpop.permute.xlu0 %1825
        %1831 = vrot.lane.b32.xlu0 %v1805, 24
        %v1832 = vpop.permute.xlu0 %1831
        %1833 = vrot.lane.b32.xlu0 %v1810, 24
        %v1834 = vpop.permute.xlu0 %1833
        %v1837 = vsel %vm809, %v1052, %v1816
        %v1838 = vsel %vm809, %v1057, %v1818
        %v1839 = vsel %vm948, %v1837, %v1824
        %v1840 = vsel %vm948, %v1838, %v1826
        %vm1841 = vcmask 195584
        %v1842 = vsel %vm1841, %v1839, %v1832
        %v1843 = vsel %vm1841, %v1840, %v1834
        %v1844 = vld [vmem:[%s670] sm:$0xff]
        %v1845 = vld [vmem:[%s670 + $0x8] sm:$0xff]
        %v1846 = vld [vmem:[%s670 + $0x10] sm:$0xff]
        %v1847 = vld [vmem:[%s670 + $0x18] sm:$0xff]
        %v1848 = vld [vmem:[%s673] sm:$0x1]
        %v1850 = vlaneseq
        %v1851 = vshrl.u32 %v1850, 7
        %v1852 = vsub.s32 0, %v1851
        %v1853 = vrot.slane %v1848, %v1852
        %v1856 = vsel %vm724, %v1842, 0
        %v1859 = vsel %vm724, %v1843, 0
        %1861 = vmatprep.subr.mxu0 0.0
        %1862 = vmatpush1.msra.mxu0 %v1844
        %1863 = vmatprep.subr.mxu0 0.0
        %1864 = vmatpush1.msra.mxu0 %v1845
        %1865 = vmatprep.subr.mxu0 0.0
        %1866 = vmatpush1.msra.mxu0 %v1846
        %1867 = vmatprep.subr.mxu0 0.0
        %1868 = vmatpush1.msra.mxu0 %v1847
        %1869 = vmatprep.subr.mxu0 0.0
        %1870 = vmatpush1.msra.mxu0 0.0
        %1871 = vmatprep.subr.mxu0 0.0
        %1872 = vmatpush1.msra.mxu0 0.0
        %1873 = vmatprep.subr.mxu0 0.0
        %1874 = vmatpush1.msra.mxu0 0.0
        %1875 = vmatprep.subr.mxu0 0.0
        %1876 = vmatpush1.msra.mxu0 0.0
        %1877 = vmatprep.subr.mxu0 0.0
        %1878 = vmatpush1.msra.mxu0 0.0
        %1879 = vmatprep.subr.mxu0 0.0
        %1880 = vmatpush1.msra.mxu0 0.0
        %1881 = vmatprep.subr.mxu0 0.0
        %1882 = vmatpush1.msra.mxu0 0.0
        %1883 = vmatprep.subr.mxu0 0.0
        %1884 = vmatpush1.msra.mxu0 0.0
        %1885 = vmatprep.subr.mxu0 0.0
        %1886 = vmatpush1.msra.mxu0 0.0
        %1887 = vmatprep.subr.mxu0 0.0
        %1888 = vmatpush1.msra.mxu0 0.0
        %1889 = vmatprep.subr.mxu0 0.0
        %1890 = vmatpush1.msra.mxu0 0.0
        %1891 = vmatprep.subr.mxu0 0.0
        %1892 = vmatpush1.msra.mxu0 0.0
        %1893 = vmatprep.subr.mxu0 0.0
        %1894 = vmatpush1.msra.mxu0 0.0
        %1895 = vmatprep.subr.mxu0 0.0
        %1896 = vmatpush1.msra.mxu0 0.0
        %1897 = vmatprep.subr.mxu0 0.0
        %1898 = vmatpush1.msra.mxu0 0.0
        %1899 = vmatprep.subr.mxu0 0.0
        %1900 = vmatpush1.msra.mxu0 0.0
        %1901 = vmatprep.subr.mxu0 0.0
        %1902 = vmatpush1.msra.mxu0 0.0
        %1903 = vmatprep.subr.mxu0 0.0
        %1904 = vmatpush1.msra.mxu0 0.0
        %1905 = vmatprep.subr.mxu0 0.0
        %1906 = vmatpush1.msra.mxu0 0.0
        %1907 = vmatprep.subr.mxu0 0.0
        %1908 = vmatpush1.msra.mxu0 0.0
        %1909 = vmatprep.subr.mxu0 0.0
        %1910 = vmatpush1.msra.mxu0 0.0
        %1911 = vmatprep.subr.mxu0 0.0
        %1912 = vmatpush1.msra.mxu0 0.0
        %1913 = vmatprep.subr.mxu0 0.0
        %1914 = vmatpush1.msra.mxu0 0.0
        %1915 = vmatprep.subr.mxu0 0.0
        %1916 = vmatpush1.msra.mxu0 0.0
        %1917 = vmatprep.subr.mxu0 0.0
        %1918 = vmatpush1.msra.mxu0 0.0
        %1919 = vmatprep.subr.mxu0 0.0
        %1920 = vmatpush1.msra.mxu0 0.0
        %1921 = vmatprep.subr.mxu0 0.0
        %1922 = vmatpush1.msra.mxu0 0.0
        %1923 = vmatprep.subr.mxu0 0.0
        %1924 = vmatpush1.msra.mxu0 0.0
        %1925 = vmatprep.mubr.f32.mxu0 0.0
        %1926 = vmatmul.mubr.f32.gmra.mrb[0].mxu0 %v1856
        %v1927 = vpop.f32.mrb[0].mxu0
        %v1928 = vadd.f32 %v1853, %v1927
        %v1929 = vpop.f32.mrb[0].mxu0
        %1930 = vmatprep.mubr.f32.mxu0 0.0
        %1931 = vmatmul.mubr.f32.gmra.mrb[0].mxu0 %v1859
        %v1932 = vpop.f32.mrb[0].mxu0
        %v1933 = vadd.f32 %v1853, %v1932
        %v1934 = vpop.f32.mrb[0].mxu0
        %1935 = vdwg.mxu0
        %v1936 = vld [vmem:[%s676] sm:$0x1]
        %v1937 = vld [vmem:[%s679] sm:$0x1]
        %v1938 = vsel %vm724, %v1928, 0.0
        %1939 = vadd.xlane.f32.xlu0 %v1938
        %v1940 = vpop.xlane.xlu0 %1939
        %v1941 = vsel %vm724, %v1933, 0.0
        %1942 = vadd.xlane.f32.xlu0 %v1941
        %v1943 = vpop.xlane.xlu0 %1942
        %v1944 = vrcp.pop 32.0
        %v1945 = vmul.f32 %v1940, %v1944
        %v1946 = vmul.f32 %v1943, %v1944
        %v1947 = vsub.f32 %v1928, %v1945
        %v1948 = vsub.f32 %v1933, %v1946
        %v1949 = vmul.f32 %v1947, %v1947
        %v1950 = vmul.f32 %v1948, %v1948
        %v1951 = vsel %vm724, %v1949, 0.0
        %1952 = vadd.xlane.f32.xlu0 %v1951
        %v1953 = vpop.xlane.xlu0 %1952
        %v1954 = vsel %vm724, %v1950, 0.0
        %1955 = vadd.xlane.f32.xlu0 %v1954
        %v1956 = vpop.xlane.xlu0 %1955
        %v1957 = vmul.f32 %v1953, %v1944
        %v1958 = vmul.f32 %v1956, %v1944
        %v1959 = vadd.f32 %v1957, 1e-05
        %v1960 = vadd.f32 %v1958, 1e-05
        %v1961 = vrsqrt.pop %v1959
        %v1962 = vrsqrt.pop %v1960
        %v1963 = vmul.f32 %v1947, %v1961
        %v1964 = vmul.f32 %v1948, %v1962
        %v1966 = vlaneseq
        %v1967 = vshrl.u32 %v1966, 7
        %v1968 = vsub.s32 0, %v1967
        %v1969 = vrot.slane %v1936, %v1968
        %v1971 = vmul.f32 %v1963, %v1969
        %v1972 = vmul.f32 %v1964, %v1969
        %v1974 = vlaneseq
        %v1975 = vshrl.u32 %v1974, 7
        %v1976 = vsub.s32 0, %v1975
        %v1977 = vrot.slane %v1937, %v1976
        %v1979 = vadd.f32 %v1971, %v1977
        %v1980 = vadd.f32 %v1972, %v1977
        %v1981 = vadd.f32 %v711, %v1979
        %v1982 = vadd.f32 %v712, %v1980
        %v1983 = vld [vmem:[%s684] sm:$0xff]
        %v1984 = vld [vmem:[%s684 + $0x8] sm:$0xff]
        %v1985 = vld [vmem:[%s684 + $0x10] sm:$0xff]
        %v1986 = vld [vmem:[%s684 + $0x18] sm:$0xff]
        %v1987 = vld [vmem:[%s687] sm:$0x1]
        %v1989 = vlaneseq
        %v1990 = vshrl.u32 %v1989, 7
        %v1991 = vsub.s32 0, %v1990
        %v1992 = vrot.slane %v1987, %v1991
        %v1995 = vsel %vm724, %v1981, 0
        %v1998 = vsel %vm724, %v1982, 0
        %2000 = vmatprep.subr.mxu0 0.0
        %2001 = vmatpush1.msra.mxu0 %v1983
        %2002 = vmatprep.subr.mxu0 0.0
        %2003 = vmatpush1.msra.mxu0 %v1984
        %2004 = vmatprep.subr.mxu0 0.0
        %2005 = vmatpush1.msra.mxu0 %v1985
        %2006 = vmatprep.subr.mxu0 0.0
        %2007 = vmatpush1.msra.mxu0 %v1986
        %2008 = vmatprep.subr.mxu0 0.0
        %2009 = vmatpush1.msra.mxu0 0.0
        %2010 = vmatprep.subr.mxu0 0.0
        %2011 = vmatpush1.msra.mxu0 0.0
        %2012 = vmatprep.subr.mxu0 0.0
        %2013 = vmatpush1.msra.mxu0 0.0
        %2014 = vmatprep.subr.mxu0 0.0
        %2015 = vmatpush1.msra.mxu0 0.0
        %2016 = vmatprep.subr.mxu0 0.0
        %2017 = vmatpush1.msra.mxu0 0.0
        %2018 = vmatprep.subr.mxu0 0.0
        %2019 = vmatpush1.msra.mxu0 0.0
        %2020 = vmatprep.subr.mxu0 0.0
        %2021 = vmatpush1.msra.mxu0 0.0
        %2022 = vmatprep.subr.mxu0 0.0
        %2023 = vmatpush1.msra.mxu0 0.0
        %2024 = vmatprep.subr.mxu0 0.0
        %2025 = vmatpush1.msra.mxu0 0.0
        %2026 = vmatprep.subr.mxu0 0.0
        %2027 = vmatpush1.msra.mxu0 0.0
        %2028 = vmatprep.subr.mxu0 0.0
        %2029 = vmatpush1.msra.mxu0 0.0
        %2030 = vmatprep.subr.mxu0 0.0
        %2031 = vmatpush1.msra.mxu0 0.0
        %2032 = vmatprep.subr.mxu0 0.0
        %2033 = vmatpush1.msra.mxu0 0.0
        %2034 = vmatprep.subr.mxu0 0.0
        %2035 = vmatpush1.msra.mxu0 0.0
        %2036 = vmatprep.subr.mxu0 0.0
        %2037 = vmatpush1.msra.mxu0 0.0
        %2038 = vmatprep.subr.mxu0 0.0
        %2039 = vmatpush1.msra.mxu0 0.0
        %2040 = vmatprep.subr.mxu0 0.0
        %2041 = vmatpush1.msra.mxu0 0.0
        %2042 = vmatprep.subr.mxu0 0.0
        %2043 = vmatpush1.msra.mxu0 0.0
        %2044 = vmatprep.subr.mxu0 0.0
        %2045 = vmatpush1.msra.mxu0 0.0
        %2046 = vmatprep.subr.mxu0 0.0
        %2047 = vmatpush1.msra.mxu0 0.0
        %2048 = vmatprep.subr.mxu0 0.0
        %2049 = vmatpush1.msra.mxu0 0.0
        %2050 = vmatprep.subr.mxu0 0.0
        %2051 = vmatpush1.msra.mxu0 0.0
        %2052 = vmatprep.subr.mxu0 0.0
        %2053 = vmatpush1.msra.mxu0 0.0
        %2054 = vmatprep.subr.mxu0 0.0
        %2055 = vmatpush1.msra.mxu0 0.0
        %2056 = vmatprep.subr.mxu0 0.0
        %2057 = vmatpush1.msra.mxu0 0.0
        %2058 = vmatprep.subr.mxu0 0.0
        %2059 = vmatpush1.msra.mxu0 0.0
        %2060 = vmatprep.subr.mxu0 0.0
        %2061 = vmatpush1.msra.mxu0 0.0
        %2062 = vmatprep.subr.mxu0 0.0
        %2063 = vmatpush1.msra.mxu0 0.0
        %2064 = vmatprep.mubr.f32.mxu0 0.0
        %2065 = vmatmul.mubr.f32.gmra.mrb[0].mxu0 %v1995
        %v2066 = vpop.f32.mrb[0].mxu0
        %v2067 = vadd.f32 %v1992, %v2066
        %v2068 = vpop.f32.mrb[0].mxu0
        %2069 = vmatprep.mubr.f32.mxu0 0.0
        %2070 = vmatmul.mubr.f32.gmra.mrb[0].mxu0 %v1998
        %v2071 = vpop.f32.mrb[0].mxu0
        %v2072 = vadd.f32 %v1992, %v2071
        %v2073 = vpop.f32.mrb[0].mxu0
        %2074 = vdwg.mxu0
        %v2075 = vmul.f32 %v2067, 0.5
        %v2076 = vmul.f32 %v2072, 0.5
        %v2077 = vmul.f32 %v2067, 0.70710677
        %v2078 = vmul.f32 %v2072, 0.70710677
        %vm2079 = vcmp.ge.f32.partialorder %v2077, 0.0
        %vm2080 = vcmp.ge.f32.partialorder %v2078, 0.0
        %v2081 = vsel %vm2079, 1.0, -1.0
        %v2082 = vsel %vm2080, 1.0, -1.0
        %v2083 = vand.u32 2147483647, %v2077
        %v2084 = vand.u32 2147483647, %v2078
        %v2085 = vmul.f32 %v2083, 0.3275911
        %v2086 = vmul.f32 %v2084, 0.3275911
        %v2087 = vadd.f32 %v2085, 1.0
        %v2088 = vadd.f32 %v2086, 1.0
        %v2089 = vrcp.pop %v2087
        %v2090 = vmul.f32 1.0, %v2089
        %v2091 = vrcp.pop %v2088
        %v2092 = vmul.f32 1.0, %v2091
        %v2093 = vmul.f32 %v2090, 1.0614054
        %v2094 = vmul.f32 %v2092, 1.0614054
        %v2095 = vadd.f32 %v2093, -1.4531521
        %v2096 = vadd.f32 %v2094, -1.4531521
        %v2097 = vmul.f32 %v2095, %v2090
        %v2098 = vmul.f32 %v2096, %v2092
        %v2099 = vadd.f32 %v2097, 1.4214138
        %v2100 = vadd.f32 %v2098, 1.4214138
        %v2101 = vmul.f32 %v2099, %v2090
        %v2102 = vmul.f32 %v2100, %v2092
        %v2103 = vadd.f32 %v2101, -0.28449672
        %v2104 = vadd.f32 %v2102, -0.28449672
        %v2105 = vmul.f32 %v2103, %v2090
        %v2106 = vmul.f32 %v2104, %v2092
        %v2107 = vadd.f32 %v2105, 0.2548296
        %v2108 = vadd.f32 %v2106, 0.2548296
        %v2109 = vmul.f32 %v2107, %v2090
        %v2110 = vmul.f32 %v2108, %v2092
        %v2111 = vsub.f32 0.0, %v2083
        %v2112 = vsub.f32 0.0, %v2084
        %v2113 = vmul.f32 %v2111, %v2083
        %v2114 = vmul.f32 %v2112, %v2084
        %v2115 = vmul.f32 %v2113, 1.442695
        %v2116 = vpow.pop %v2115
        %v2117 = vmul.f32 %v2114, 1.442695
        %v2118 = vpow.pop %v2117
        %v2119 = vmul.f32 %v2109, %v2116
        %v2120 = vmul.f32 %v2110, %v2118
        %v2121 = vsub.f32 1.0, %v2119
        %v2122 = vsub.f32 1.0, %v2120
        %v2123 = vmul.f32 %v2081, %v2121
        %v2124 = vmul.f32 %v2082, %v2122
        %v2125 = vadd.f32 %v2123, 1.0
        %v2126 = vadd.f32 %v2124, 1.0
        %v2127 = vmul.f32 %v2075, %v2125
        %v2128 = vmul.f32 %v2076, %v2126
        %v2129 = vld [vmem:[%s692] sm:$0xff]
        %v2130 = vld [vmem:[%s692 + $0x8] sm:$0xff]
        %v2131 = vld [vmem:[%s692 + $0x10] sm:$0xff]
        %v2132 = vld [vmem:[%s692 + $0x18] sm:$0xff]
        %v2133 = vld [vmem:[%s692 + $0x20] sm:$0xff]
        %v2134 = vld [vmem:[%s692 + $0x28] sm:$0xff]
        %v2135 = vld [vmem:[%s692 + $0x30] sm:$0xff]
        %v2136 = vld [vmem:[%s692 + $0x38] sm:$0xff]
        %v2137 = vld [vmem:[%s692 + $0x40] sm:$0xff]
        %v2138 = vld [vmem:[%s692 + $0x48] sm:$0xff]
        %v2139 = vld [vmem:[%s692 + $0x50] sm:$0xff]
        %v2140 = vld [vmem:[%s692 + $0x58] sm:$0xff]
        %v2141 = vld [vmem:[%s692 + $0x60] sm:$0xff]
        %v2142 = vld [vmem:[%s692 + $0x68] sm:$0xff]
        %v2143 = vld [vmem:[%s692 + $0x70] sm:$0xff]
        %v2144 = vld [vmem:[%s692 + $0x78] sm:$0xff]
        %v2145 = vld [vmem:[%s695] sm:$0x1]
        %v2147 = vlaneseq
        %v2148 = vshrl.u32 %v2147, 7
        %v2149 = vsub.s32 0, %v2148
        %v2150 = vrot.slane %v2145, %v2149
        %2152 = vmatprep.subr.mxu0 0.0
        %2153 = vmatpush1.msra.mxu0 %v2129
        %2154 = vmatprep.subr.mxu0 0.0
        %2155 = vmatpush1.msra.mxu0 %v2130
        %2156 = vmatprep.subr.mxu0 0.0
        %2157 = vmatpush1.msra.mxu0 %v2131
        %2158 = vmatprep.subr.mxu0 0.0
        %2159 = vmatpush1.msra.mxu0 %v2132
        %2160 = vmatprep.subr.mxu0 0.0
        %2161 = vmatpush1.msra.mxu0 %v2133
        %2162 = vmatprep.subr.mxu0 0.0
        %2163 = vmatpush1.msra.mxu0 %v2134
        %2164 = vmatprep.subr.mxu0 0.0
        %2165 = vmatpush1.msra.mxu0 %v2135
        %2166 = vmatprep.subr.mxu0 0.0
        %2167 = vmatpush1.msra.mxu0 %v2136
        %2168 = vmatprep.subr.mxu0 0.0
        %2169 = vmatpush1.msra.mxu0 %v2137
        %2170 = vmatprep.subr.mxu0 0.0
        %2171 = vmatpush1.msra.mxu0 %v2138
        %2172 = vmatprep.subr.mxu0 0.0
        %2173 = vmatpush1.msra.mxu0 %v2139
        %2174 = vmatprep.subr.mxu0 0.0
        %2175 = vmatpush1.msra.mxu0 %v2140
        %2176 = vmatprep.subr.mxu0 0.0
        %2177 = vmatpush1.msra.mxu0 %v2141
        %2178 = vmatprep.subr.mxu0 0.0
        %2179 = vmatpush1.msra.mxu0 %v2142
        %2180 = vmatprep.subr.mxu0 0.0
        %2181 = vmatpush1.msra.mxu0 %v2143
        %2182 = vmatprep.subr.mxu0 0.0
        %2183 = vmatpush1.msra.mxu0 %v2144
        %2184 = vmatprep.subr.mxu0 0.0
        %2185 = vmatpush1.msra.mxu0 0.0
        %2186 = vmatprep.subr.mxu0 0.0
        %2187 = vmatpush1.msra.mxu0 0.0
        %2188 = vmatprep.subr.mxu0 0.0
        %2189 = vmatpush1.msra.mxu0 0.0
        %2190 = vmatprep.subr.mxu0 0.0
        %2191 = vmatpush1.msra.mxu0 0.0
        %2192 = vmatprep.subr.mxu0 0.0
        %2193 = vmatpush1.msra.mxu0 0.0
        %2194 = vmatprep.subr.mxu0 0.0
        %2195 = vmatpush1.msra.mxu0 0.0
        %2196 = vmatprep.subr.mxu0 0.0
        %2197 = vmatpush1.msra.mxu0 0.0
        %2198 = vmatprep.subr.mxu0 0.0
        %2199 = vmatpush1.msra.mxu0 0.0
        %2200 = vmatprep.subr.mxu0 0.0
        %2201 = vmatpush1.msra.mxu0 0.0
        %2202 = vmatprep.subr.mxu0 0.0
        %2203 = vmatpush1.msra.mxu0 0.0
        %2204 = vmatprep.subr.mxu0 0.0
        %2205 = vmatpush1.msra.mxu0 0.0
        %2206 = vmatprep.subr.mxu0 0.0
        %2207 = vmatpush1.msra.mxu0 0.0
        %2208 = vmatprep.subr.mxu0 0.0
        %2209 = vmatpush1.msra.mxu0 0.0
        %2210 = vmatprep.subr.mxu0 0.0
        %2211 = vmatpush1.msra.mxu0 0.0
        %2212 = vmatprep.subr.mxu0 0.0
        %2213 = vmatpush1.msra.mxu0 0.0
        %2214 = vmatprep.subr.mxu0 0.0
        %2215 = vmatpush1.msra.mxu0 0.0
        %2216 = vmatprep.mubr.f32.mxu0 0.0
        %2217 = vmatmul.mubr.f32.gmra.mrb[0].mxu0 %v2127
        %v2218 = vpop.f32.mrb[0].mxu0
        %v2219 = vadd.f32 %v2150, %v2218
        %v2220 = vpop.f32.mrb[0].mxu0
        %2221 = vmatprep.mubr.f32.mxu0 0.0
        %2222 = vmatmul.mubr.f32.gmra.mrb[0].mxu0 %v2128
        %v2223 = vpop.f32.mrb[0].mxu0
        %v2224 = vadd.f32 %v2150, %v2223
        %v2225 = vpop.f32.mrb[0].mxu0
        %2226 = vdwg.mxu0
        %v2227 = vld [vmem:[%s698] sm:$0x1]
        %v2228 = vld [vmem:[%s701] sm:$0x1]
        %v2229 = vsel %vm724, %v2219, 0.0
        %2230 = vadd.xlane.f32.xlu0 %v2229
        %v2231 = vpop.xlane.xlu0 %2230
        %v2232 = vsel %vm724, %v2224, 0.0
        %2233 = vadd.xlane.f32.xlu0 %v2232
        %v2234 = vpop.xlane.xlu0 %2233
        %v2235 = vmul.f32 %v2231, %v1944
        %v2236 = vmul.f32 %v2234, %v1944
        %v2237 = vsub.f32 %v2219, %v2235
        %v2238 = vsub.f32 %v2224, %v2236
        %v2239 = vmul.f32 %v2237, %v2237
        %v2240 = vmul.f32 %v2238, %v2238
        %v2241 = vsel %vm724, %v2239, 0.0
        %2242 = vadd.xlane.f32.xlu0 %v2241
        %v2243 = vpop.xlane.xlu0 %2242
        %v2244 = vsel %vm724, %v2240, 0.0
        %2245 = vadd.xlane.f32.xlu0 %v2244
        %v2246 = vpop.xlane.xlu0 %2245
        %v2247 = vmul.f32 %v2243, %v1944
        %v2248 = vmul.f32 %v2246, %v1944
        %v2249 = vadd.f32 %v2247, 1e-05
        %v2250 = vadd.f32 %v2248, 1e-05
        %v2251 = vrsqrt.pop %v2249
        %v2252 = vrsqrt.pop %v2250
        %v2253 = vmul.f32 %v2237, %v2251
        %v2254 = vmul.f32 %v2238, %v2252
        %v2256 = vlaneseq
        %v2257 = vshrl.u32 %v2256, 7
        %v2258 = vsub.s32 0, %v2257
        %v2259 = vrot.slane %v2227, %v2258
        %v2261 = vmul.f32 %v2253, %v2259
        %v2262 = vmul.f32 %v2254, %v2259
        %v2264 = vlaneseq
        %v2265 = vshrl.u32 %v2264, 7
        %v2266 = vsub.s32 0, %v2265
        %v2267 = vrot.slane %v2228, %v2266
        %v2269 = vadd.f32 %v2261, %v2267
        %v2270 = vadd.f32 %v2262, %v2267
        %v2271 = vadd.f32 %v1981, %v2269
        %v2272 = vadd.f32 %v1982, %v2270
        %2273 = vst.msk [vmem:[#allocation5] sm:$0xff] %vm724, %v2271
        %2274 = vst.msk [vmem:[#allocation5 + $0x8] sm:$0xff] %vm724, %v2272
        // Predicated region
        $region89: #{tpu_custom_call.1} parent=79 // pred_check
          %p2275 = pneg %p426
        $region90: #{tpu_custom_call.1} parent=79 // pred_check_branch
          %2277 = sbr.rel (%p2275) target = $region92
        $region91: #{tpu_custom_call.1} parent=79 // pred_region
          %s2279 = ssub.s32 256, 256
          %2280 = vsyncadd [#allocation4], %s2279
          %s2281 = sshll.u32 [#allocation5], 4
          %s2282 = int_to_ptr.vmem [resolvable:$true] %s2281
          %2287 = dma.vmem_to_hbm [thread:$0]  %s2282, 256, %s15, [#allocation4], 128, 128, 8
        $region92: #{tpu_custom_call.1} parent=79 // pred_fallthru
          _
        // Predicated region
        $region93: #{tpu_custom_call.1} parent=79 // pred_check
          %p2288 = pneg %p426
        $region94: #{tpu_custom_call.1} parent=79 // pred_check_branch
          %2290 = sbr.rel (%p2288) target = $region96
        $region95: #{tpu_custom_call.1} parent=79 // pred_region
          %2291 = dma.done [#allocation4], 256
        $region96: #{tpu_custom_call.1} parent=79 // pred_fallthru
          _
      $region80: #{tpu_custom_call.1} parent=5 // pred_fallthru
        _
      %p2292 = scmp.le.s32.totalorder 2, %s23
      // Predicated region
      $region97: #{tpu_custom_call.1} parent=5 // pred_check
        %p2293 = pneg %p2292
      $region98: #{tpu_custom_call.1} parent=5 // pred_check_branch
        %2295 = sbr.rel (%p2293) target = $region100
      $region99: #{tpu_custom_call.1} parent=5 // pred_region
        %s2296 = ssub.s32 %s23, 2
      $region100: #{tpu_custom_call.1} parent=5 // pred_fallthru
        _
    $region6: #{tpu_custom_call.1} parent=1 // loop_footer
      %s27 = sadd.s32 1, %s23
    $region7: #{tpu_custom_call.1} parent=1 // loop_footer_branch
      %22 = sbr.rel target = $region3
    $region8: #{tpu_custom_call.1} parent=1 // loop_exit
      _
    %2297 = vsyncpa [#allocation3], 1
    %s2298 = scalar_lea.sflag [#allocation3], 1
    %2299 = vsyncpa %s2298, 1
    %2300 = vsyncpa [#allocation4], 1
    %s2301 = scalar_lea.sflag [#allocation4], 1
    %2302 = vsyncpa %s2301, 1

</llo_original>
